<compile_context>
chip_gen: v5e
topology: v5e:2x2
jax: 0.10.0
libtpu: 0.0.40
codegen_flags: <defaults>
</compile_context>

<pallas_src>
import functools

import jax
import jax.numpy as jnp
from jax import lax
from jax.experimental import pallas as pl
from jax.experimental.pallas import tpu as pltpu


def _round_up(x, m):
    return ((x + m - 1) // m) * m


def _comp_layer_kernel(src_ref, dst_ref, rel_ref, ent_t_ref, rel_t_ref, w_ref,
                       out_ref, m_sc, l_sc, acc_sc,
                       *, comp_op: str, use_bn: bool, n_valid_nodes: int):
    f32 = jnp.float32
    NEG = jnp.float32(-1e30)          # finite sentinel (avoids -inf - -inf NaNs)

    d_pad, n_pad = ent_t_ref.shape    # [D_pad, N_pad]
    r_pad = rel_t_ref.shape[1]        # [D_pad, R_pad]
    t = src_ref.shape[1]              # edge tile size

    step = pl.program_id(0)

    @pl.when(step == 0)
    def _init():
        m_sc[...] = jnp.full_like(m_sc, NEG)
        l_sc[...] = jnp.zeros_like(l_sc)
        acc_sc[...] = jnp.zeros_like(acc_sc)

    src = src_ref[...]                # [1, T] int32 (padded edges carry -1)
    dst = dst_ref[...]                # [1, T]
    rel = rel_ref[...]                # [1, T]

    # In-kernel one-hot selectors (VPU compares, no HBM traffic).
    node_iota = lax.broadcasted_iota(jnp.int32, (n_pad, t), 0)   # [N_pad, T]
    rel_iota = lax.broadcasted_iota(jnp.int32, (r_pad, t), 0)    # [R_pad, T]
    oh_src = (node_iota == src).astype(f32)                      # [N_pad, T]
    oh_dst_b = node_iota == dst                                  # bool [N_pad, T]
    oh_dst = oh_dst_b.astype(f32)                                # [N_pad, T]
    oh_rel = (rel_iota == rel).astype(f32)                       # [R_pad, T]

    ent_t = ent_t_ref[...]            # [D_pad, N_pad]
    rel_t = rel_t_ref[...]            # [D_pad, R_pad]

    # Feature-major gathers on the MXU (lane-dense [D_pad, T] outputs).
    h_src = jnp.dot(ent_t, oh_src, preferred_element_type=f32)   # [D_pad, T]
    h_rel = jnp.dot(rel_t, oh_rel, preferred_element_type=f32)   # [D_pad, T]
    h_dst = jnp.dot(ent_t, oh_dst, preferred_element_type=f32)   # [D_pad, T]

    if comp_op == 'add':
        comp = h_src + h_rel                                     # [D_pad, T]
    else:  # 'mul'
        comp = h_src * h_rel

    # e_dot_v:  score[e] = <comp[e], ent[dst[e]]>
    score = jnp.sum(comp * h_dst, axis=0, keepdims=True)         # [1, T]

    # --- online edge_softmax over incoming edges of each destination node ---
    masked = jnp.where(oh_dst_b, score, NEG)                     # [N_pad, T]
    tile_max = jnp.max(masked, axis=1, keepdims=True)            # [N_pad, 1]
    m_old = m_sc[...]
    m_new = jnp.maximum(m_old, tile_max)                         # [N_pad, 1]
    scale = jnp.exp(m_old - m_new)                               # [N_pad, 1]

    # per-edge gather of its destination's running max (exactly-one-hot sum)
    m_e = jnp.sum(oh_dst * m_new, axis=0, keepdims=True)         # [1, T]
    ex = jnp.exp(score - m_e)                                    # [1, T] (<=1)

    # running denominator (per node) and weighted scatter-add of comp_emb
    l_sc[...] = l_sc[...] * scale + jnp.sum(oh_dst * ex, axis=1, keepdims=True)
    weighted = comp * ex                                         # [D_pad, T]
    acc_sc[...] = acc_sc[...] * scale + lax.dot_general(
        oh_dst, weighted, (((1,), (1,)), ((), ())),
        preferred_element_type=f32)                              # [N_pad, D_pad]
    m_sc[...] = m_new

    @pl.when(step == pl.num_programs(0) - 1)
    def _finalize():
        # guard nodes with no incoming edges (and padded nodes): denom == 0
        denom = jnp.maximum(l_sc[...], jnp.float32(1e-30))       # [N_pad, 1]
        neigh = acc_sc[...] * pl.reciprocal(denom, approx=False) # [N_pad, D_pad]
        z = jnp.dot(neigh, w_ref[...], preferred_element_type=f32)
        if use_bn:
            # BatchNorm1d, training-mode normalization (biased variance,
            # eps=1e-5, affine weight=1 / bias=0 at init), statistics over the
            # real (unpadded) node rows only.
            # TODO(synk): running-mean/var state update is not modelled here.
            rows = lax.broadcasted_iota(jnp.int32, (z.shape[0], 1), 0)
            rmask = (rows < n_valid_nodes).astype(f32)           # [N_pad, 1]
            cnt = jnp.float32(n_valid_nodes)
            mean = jnp.sum(z * rmask, axis=0, keepdims=True) / cnt
            cent = (z - mean) * rmask
            var = jnp.sum(cent * cent, axis=0, keepdims=True) / cnt
            z = (z - mean) * lax.rsqrt(var + jnp.float32(1e-5))
        out_ref[...] = jnp.tanh(z).astype(out_ref.dtype)


def comp_layer(src_ids, dst_ids, rel_ids, ent_emb, rel_emb, neigh_w,
               comp_op='mul', use_bn=False, edge_tile=256):
    """Pallas TPU implementation of CompLayer.forward.

    src_ids, dst_ids, rel_ids: int32 [E]
    ent_emb: f32 [N, D], rel_emb: f32 [2*n_rel, D], neigh_w: f32 [D, D]
    returns: f32 [N, D]
    """
    assert comp_op in ('add', 'mul')
    assert edge_tile % 128 == 0

    E = src_ids.shape[0]
    N, D = ent_emb.shape
    R2 = rel_emb.shape[0]

    n_pad = _round_up(N, 128)
    d_pad = _round_up(D, 128)
    r_pad = _round_up(R2, 128)
    e_pad = _round_up(max(E, 1), edge_tile)
    num_tiles = e_pad // edge_tile

    f32 = jnp.float32
    # Pre-transposed, zero-padded parameter tensors (feature-major for gathers).
    ent_t = jnp.zeros((d_pad, n_pad), f32).at[:D, :N].set(ent_emb.T.astype(f32))
    rel_t = jnp.zeros((d_pad, r_pad), f32).at[:D, :R2].set(rel_emb.T.astype(f32))
    w_pad = jnp.zeros((d_pad, d_pad), f32).at[:D, :D].set(neigh_w.astype(f32))

    def pad_ids(ids):
        ids = ids.astype(jnp.int32)
        pad = jnp.full((e_pad - E,), -1, jnp.int32)   # -1 => all-zero one-hot
        return jnp.concatenate([ids, pad])[None, :]   # [1, E_pad]

    src_row = pad_ids(src_ids)
    dst_row = pad_ids(dst_ids)
    rel_row = pad_ids(rel_ids)

    kernel = functools.partial(_comp_layer_kernel, comp_op=comp_op,
                               use_bn=use_bn, n_valid_nodes=N)

    # Rough advisory cost estimate for the XLA scheduler.
    flops = (2 * num_tiles * edge_tile * d_pad * (2 * n_pad + r_pad)      # gathers
             + 2 * num_tiles * n_pad * edge_tile * d_pad                  # scatter
             + 2 * n_pad * d_pad * d_pad)                                 # @ neigh_w
    transcendentals = num_tiles * (edge_tile + 2 * n_pad) + n_pad * d_pad
    bytes_accessed = 4 * (d_pad * n_pad + d_pad * r_pad + d_pad * d_pad
                          + n_pad * d_pad + 3 * e_pad)

    out = pl.pallas_call(
        kernel,
        out_shape=jax.ShapeDtypeStruct((n_pad, d_pad), f32),
        grid_spec=pltpu.PrefetchScalarGridSpec(
            num_scalar_prefetch=0,
            grid=(num_tiles,),
            in_specs=[
                pl.BlockSpec((1, edge_tile), lambda i: (0, i)),   # src ids
                pl.BlockSpec((1, edge_tile), lambda i: (0, i)),   # dst ids
                pl.BlockSpec((1, edge_tile), lambda i: (0, i)),   # rel ids
                pl.BlockSpec((d_pad, n_pad), lambda i: (0, 0)),   # ent_emb^T
                pl.BlockSpec((d_pad, r_pad), lambda i: (0, 0)),   # rel_emb^T
                pl.BlockSpec((d_pad, d_pad), lambda i: (0, 0)),   # neigh_w
            ],
            out_specs=pl.BlockSpec((n_pad, d_pad), lambda i: (0, 0)),
            scratch_shapes=[
                pltpu.VMEM((n_pad, 1), f32),       # running max  m
                pltpu.VMEM((n_pad, 1), f32),       # running denom l
                pltpu.VMEM((n_pad, d_pad), f32),   # accumulator
            ]),
        compiler_params=pltpu.CompilerParams(
            dimension_semantics=("arbitrary",),
            vmem_limit_bytes=32 * 1024 * 1024),
        cost_estimate=pl.CostEstimate(
            flops=int(flops),
            transcendentals=int(transcendentals),
            bytes_accessed=int(bytes_accessed)),
    )(src_row, dst_row, rel_row, ent_t, rel_t, w_pad)

    return out[:N, :D]


def comp_layer_reference(src_ids, dst_ids, rel_ids, ent_emb, rel_emb, neigh_w,
                         comp_op='mul', use_bn=False):
    """Pure-JAX reference (segment ops) for correctness checking."""
    N = ent_emb.shape[0]
    h_src = ent_emb[src_ids]
    h_rel = rel_emb[rel_ids]
    h_dst = ent_emb[dst_ids]
    comp = h_src + h_rel if comp_op == 'add' else h_src * h_rel
    score = jnp.sum(comp * h_dst, axis=-1)                       # [E]
    m = jax.ops.segment_max(score, dst_ids, num_segments=N)
    ex = jnp.exp(score - m[dst_ids])
    denom = jax.ops.segment_sum(ex, dst_ids, num_segments=N)
    alpha = ex / denom[dst_ids]
    neigh = jax.ops.segment_sum(comp * alpha[:, None], dst_ids, num_segments=N)
    z = neigh @ neigh_w
    if use_bn:
        mean = jnp.mean(z, axis=0, keepdims=True)
        var = jnp.mean((z - mean) ** 2, axis=0, keepdims=True)
        z = (z - mean) * lax.rsqrt(var + 1e-5)
    return jnp.tanh(z)


if __name__ == "__main__":
    key = jax.random.PRNGKey(0)
    k1, k2, k3, k4, k5, k6 = jax.random.split(key, 6)

    # small synthetic KG consistent with the module (multiple edge tiles)
    n_ent, n_rel, emb_dim, n_edges = 48, 6, 40, 600
    r2 = 2 * n_rel

    src_ids = jax.random.randint(k1, (n_edges,), 0, n_ent, dtype=jnp.int32)
    dst_ids = jax.random.randint(k2, (n_edges,), 0, n_ent, dtype=jnp.int32)
    rel_ids = jax.random.randint(k3, (n_edges,), 0, r2, dtype=jnp.int32)

    ent_emb = jax.random.normal(k4, (n_ent, emb_dim), dtype=jnp.float32)
    rel_emb = jax.random.normal(k5, (r2, emb_dim), dtype=jnp.float32)

    # get_param(emb_dim, emb_dim) -> xavier-uniform style deterministic init
    bound = (6.0 / (emb_dim + emb_dim)) ** 0.5
    neigh_w = jax.random.uniform(k6, (emb_dim, emb_dim), dtype=jnp.float32,
                                 minval=-bound, maxval=bound)

    for comp_op, use_bn in (('mul', False), ('add', True)):
        out = comp_layer(src_ids, dst_ids, rel_ids, ent_emb, rel_emb, neigh_w,
                         comp_op=comp_op, use_bn=use_bn, edge_tile=256)
        out = jax.block_until_ready(out)
        ref = comp_layer_reference(src_ids, dst_ids, rel_ids, ent_emb, rel_emb,
                                   neigh_w, comp_op=comp_op, use_bn=use_bn)
        assert out.shape == (n_ent, emb_dim)
        assert jnp.allclose(out, ref, rtol=1e-4, atol=1e-4), (
            f"mismatch for comp_op={comp_op} bn={use_bn}: "
            f"max err {jnp.max(jnp.abs(out - ref))}")

    print("KERNEL_OK")
</pallas_src>

<mosaic_0001>
module attributes {stable_mosaic.version = 11 : i64} {
  func.func @_comp_layer_kernel(%arg0: i32, %arg1: memref<1x256xi32, #tpu.memory_space<vmem>>, %arg2: memref<1x256xi32, #tpu.memory_space<vmem>>, %arg3: memref<1x256xi32, #tpu.memory_space<vmem>>, %arg4: memref<128x128xf32, #tpu.memory_space<vmem>>, %arg5: memref<128x128xf32, #tpu.memory_space<vmem>>, %arg6: memref<128x128xf32, #tpu.memory_space<vmem>>, %arg7: memref<128x128xf32, #tpu.memory_space<vmem>>, %arg8: memref<128x1xf32, #tpu.memory_space<vmem>>, %arg9: memref<128x1xf32, #tpu.memory_space<vmem>>, %arg10: memref<128x128xf32, #tpu.memory_space<vmem>>) attributes {dimension_semantics = [#tpu.dimension_semantics<arbitrary>], iteration_bounds = array<i64: 3>, scalar_prefetch = 0 : i64, scratch_operands = 3 : i64, tpu.core_type = #tpu.core_type<tc>, window_params = [{transform_indices = @transform_0, window_bounds = array<i64: 1, 256>}, {transform_indices = @transform_1, window_bounds = array<i64: 1, 256>}, {transform_indices = @transform_2, window_bounds = array<i64: 1, 256>}, {pipeline_mode = #tpu.pipeline_mode<synchronous>, transform_indices = @transform_3, window_bounds = array<i64: 128, 128>}, {pipeline_mode = #tpu.pipeline_mode<synchronous>, transform_indices = @transform_4, window_bounds = array<i64: 128, 128>}, {pipeline_mode = #tpu.pipeline_mode<synchronous>, transform_indices = @transform_5, window_bounds = array<i64: 128, 128>}, {pipeline_mode = #tpu.pipeline_mode<synchronous>, transform_indices = @transform_6, window_bounds = array<i64: 128, 128>}]} {
    %c0_i32 = arith.constant 0 : i32
    %0 = arith.cmpi eq, %arg0, %c0_i32 : i32
    %1 = arith.extui %0 : i1 to i32
    %cst = arith.constant -1.000000e+30 : f32
    %c0_i32_0 = arith.constant 0 : i32
    %2 = arith.cmpi ne, %1, %c0_i32_0 : i32
    scf.if %2 {
      %65 = vector.broadcast %cst : f32 to vector<128x1xf32>
      %c0_32 = arith.constant 0 : index
      %c0_33 = arith.constant 0 : index
      %66 = vector.load %arg8[%c0_32, %c0_33] : memref<128x1xf32, #tpu.memory_space<vmem>>, vector<128x1xf32>
      tpu.vector_store %arg8[%c0_32, %c0_33], %65 {strides = array<i32>} : memref<128x1xf32, #tpu.memory_space<vmem>>, vector<128x1xf32>,
      %cst_34 = arith.constant 0.000000e+00 : f32
      %67 = vector.broadcast %cst_34 : f32 to vector<128x1xf32>
      %c0_35 = arith.constant 0 : index
      %c0_36 = arith.constant 0 : index
      %68 = vector.load %arg9[%c0_35, %c0_36] : memref<128x1xf32, #tpu.memory_space<vmem>>, vector<128x1xf32>
      tpu.vector_store %arg9[%c0_35, %c0_36], %67 {strides = array<i32>} : memref<128x1xf32, #tpu.memory_space<vmem>>, vector<128x1xf32>,
      %cst_37 = arith.constant 0.000000e+00 : f32
      %69 = vector.broadcast %cst_37 : f32 to vector<128x128xf32>
      %c0_38 = arith.constant 0 : index
      %c0_39 = arith.constant 0 : index
      %70 = vector.load %arg10[%c0_38, %c0_39] : memref<128x128xf32, #tpu.memory_space<vmem>>, vector<128x128xf32>
      tpu.vector_store %arg10[%c0_38, %c0_39], %69 {strides = array<i32>} : memref<128x128xf32, #tpu.memory_space<vmem>>, vector<128x128xf32>,
    } else {
    }
    %c0 = arith.constant 0 : index
    %c0_1 = arith.constant 0 : index
    %3 = vector.load %arg1[%c0, %c0_1] : memref<1x256xi32, #tpu.memory_space<vmem>>, vector<1x256xi32>
    %c0_2 = arith.constant 0 : index
    %c0_3 = arith.constant 0 : index
    %4 = vector.load %arg2[%c0_2, %c0_3] : memref<1x256xi32, #tpu.memory_space<vmem>>, vector<1x256xi32>
    %c0_4 = arith.constant 0 : index
    %c0_5 = arith.constant 0 : index
    %5 = vector.load %arg3[%c0_4, %c0_5] : memref<1x256xi32, #tpu.memory_space<vmem>>, vector<1x256xi32>
    %6 = tpu.iota {dimensions = array<i32: 0>} : vector<128x256xi32>
    %7 = tpu.iota {dimensions = array<i32: 0>} : vector<128x256xi32>
    %8 = vector.broadcast %3 : vector<1x256xi32> to vector<128x256xi32>
    %9 = arith.cmpi eq, %6, %8 : vector<128x256xi32>
    %10 = arith.extui %9 : vector<128x256xi1> to vector<128x256xi32>
    %11 = arith.sitofp %10 : vector<128x256xi32> to vector<128x256xf32>
    %12 = vector.broadcast %4 : vector<1x256xi32> to vector<128x256xi32>
    %13 = arith.cmpi eq, %6, %12 : vector<128x256xi32>
    %14 = arith.extui %13 : vector<128x256xi1> to vector<128x256xi32>
    %15 = arith.sitofp %14 : vector<128x256xi32> to vector<128x256xf32>
    %16 = vector.broadcast %5 : vector<1x256xi32> to vector<128x256xi32>
    %17 = arith.cmpi eq, %7, %16 : vector<128x256xi32>
    %18 = arith.extui %17 : vector<128x256xi1> to vector<128x256xi32>
    %19 = arith.sitofp %18 : vector<128x256xi32> to vector<128x256xf32>
    %c0_6 = arith.constant 0 : index
    %c0_7 = arith.constant 0 : index
    %20 = vector.load %arg4[%c0_6, %c0_7] : memref<128x128xf32, #tpu.memory_space<vmem>>, vector<128x128xf32>
    %c0_8 = arith.constant 0 : index
    %c0_9 = arith.constant 0 : index
    %21 = vector.load %arg5[%c0_8, %c0_9] : memref<128x128xf32, #tpu.memory_space<vmem>>, vector<128x128xf32>
    %cst_10 = arith.constant dense<0.000000e+00> : vector<128x256xf32>
    %22 = tpu.matmul %20, %11, %cst_10 {dimension_numbers = #tpu.dot_dimension_numbers<[1], [0], [0], [1], [0, 0, 1, 1], [], []>} : vector<128x128xf32>, vector<128x256xf32>, vector<128x256xf32> -> vector<128x256xf32>
    %cst_11 = arith.constant dense<0.000000e+00> : vector<128x256xf32>
    %23 = tpu.matmul %21, %19, %cst_11 {dimension_numbers = #tpu.dot_dimension_numbers<[1], [0], [0], [1], [0, 0, 1, 1], [], []>} : vector<128x128xf32>, vector<128x256xf32>, vector<128x256xf32> -> vector<128x256xf32>
    %cst_12 = arith.constant dense<0.000000e+00> : vector<128x256xf32>
    %24 = tpu.matmul %20, %15, %cst_12 {dimension_numbers = #tpu.dot_dimension_numbers<[1], [0], [0], [1], [0, 0, 1, 1], [], []>} : vector<128x128xf32>, vector<128x256xf32>, vector<128x256xf32> -> vector<128x256xf32>
    %25 = arith.mulf %22, %23 : vector<128x256xf32>
    %26 = arith.mulf %25, %24 : vector<128x256xf32>
    %cst_13 = arith.constant dense<0.000000e+00> : vector<256xf32>
    %27 = vector.multi_reduction <add>, %26, %cst_13 [0] : vector<128x256xf32> to vector<256xf32>
    %28 = vector.shape_cast %27 : vector<256xf32> to vector<1x256xf32>
    %cst_14 = arith.constant -1.000000e+30 : f32
    %29 = vector.shape_cast %28 : vector<1x256xf32> to vector<1x256xf32>
    %30 = vector.broadcast %29 : vector<1x256xf32> to vector<128x256xf32>
    %31 = vector.broadcast %cst_14 : f32 to vector<128x256xf32>
    %32 = arith.select %13, %30, %31 : vector<128x256xi1>, vector<128x256xf32>
    %cst_15 = arith.constant dense<0xFF800000> : vector<128xf32>
    %33 = vector.multi_reduction <maximumf>, %32, %cst_15 [1] : vector<128x256xf32> to vector<128xf32>
    %34 = vector.shape_cast %33 : vector<128xf32> to vector<128x1xf32>
    %c0_16 = arith.constant 0 : index
    %c0_17 = arith.constant 0 : index
    %35 = vector.load %arg8[%c0_16, %c0_17] : memref<128x1xf32, #tpu.memory_space<vmem>>, vector<128x1xf32>
    %36 = arith.maximumf %35, %34 : vector<128x1xf32>
    %37 = arith.subf %35, %36 : vector<128x1xf32>
    %38 = math.exp %37 : vector<128x1xf32>
    %39 = vector.broadcast %36 : vector<128x1xf32> to vector<128x256xf32>
    %40 = arith.mulf %15, %39 : vector<128x256xf32>
    %cst_18 = arith.constant dense<0.000000e+00> : vector<256xf32>
    %41 = vector.multi_reduction <add>, %40, %cst_18 [0] : vector<128x256xf32> to vector<256xf32>
    %42 = vector.shape_cast %41 : vector<256xf32> to vector<1x256xf32>
    %43 = arith.subf %28, %42 : vector<1x256xf32>
    %44 = math.exp %43 : vector<1x256xf32>
    %c0_19 = arith.constant 0 : index
    %c0_20 = arith.constant 0 : index
    %45 = vector.load %arg9[%c0_19, %c0_20] : memref<128x1xf32, #tpu.memory_space<vmem>>, vector<128x1xf32>
    %46 = arith.mulf %45, %38 : vector<128x1xf32>
    %47 = vector.broadcast %44 : vector<1x256xf32> to vector<128x256xf32>
    %48 = arith.mulf %15, %47 : vector<128x256xf32>
    %cst_21 = arith.constant dense<0.000000e+00> : vector<128xf32>
    %49 = vector.multi_reduction <add>, %48, %cst_21 [1] : vector<128x256xf32> to vector<128xf32>
    %50 = vector.shape_cast %49 : vector<128xf32> to vector<128x1xf32>
    %51 = arith.addf %46, %50 : vector<128x1xf32>
    %c0_22 = arith.constant 0 : index
    %c0_23 = arith.constant 0 : index
    %52 = vector.load %arg9[%c0_22, %c0_23] : memref<128x1xf32, #tpu.memory_space<vmem>>, vector<128x1xf32>
    tpu.vector_store %arg9[%c0_22, %c0_23], %51 {strides = array<i32>} : memref<128x1xf32, #tpu.memory_space<vmem>>, vector<128x1xf32>,
    %53 = vector.broadcast %44 : vector<1x256xf32> to vector<128x256xf32>
    %54 = arith.mulf %25, %53 : vector<128x256xf32>
    %c0_24 = arith.constant 0 : index
    %c0_25 = arith.constant 0 : index
    %55 = vector.load %arg10[%c0_24, %c0_25] : memref<128x128xf32, #tpu.memory_space<vmem>>, vector<128x128xf32>
    %56 = vector.broadcast %38 : vector<128x1xf32> to vector<128x128xf32>
    %57 = arith.mulf %55, %56 : vector<128x128xf32>
    %cst_26 = arith.constant dense<0.000000e+00> : vector<128x128xf32>
    %58 = tpu.matmul %15, %54, %cst_26 {dimension_numbers = #tpu.dot_dimension_numbers<[1], [1], [0], [0], [0, 0, 1, 0], [], []>} : vector<128x256xf32>, vector<128x256xf32>, vector<128x128xf32> -> vector<128x128xf32>
    %59 = arith.addf %57, %58 : vector<128x128xf32>
    %c0_27 = arith.constant 0 : index
    %c0_28 = arith.constant 0 : index
    %60 = vector.load %arg10[%c0_27, %c0_28] : memref<128x128xf32, #tpu.memory_space<vmem>>, vector<128x128xf32>
    tpu.vector_store %arg10[%c0_27, %c0_28], %59 {strides = array<i32>} : memref<128x128xf32, #tpu.memory_space<vmem>>, vector<128x128xf32>,
    %c0_29 = arith.constant 0 : index
    %c0_30 = arith.constant 0 : index
    %61 = vector.load %arg8[%c0_29, %c0_30] : memref<128x1xf32, #tpu.memory_space<vmem>>, vector<128x1xf32>
    tpu.vector_store %arg8[%c0_29, %c0_30], %36 {strides = array<i32>} : memref<128x1xf32, #tpu.memory_space<vmem>>, vector<128x1xf32>,
    %c2_i32 = arith.constant 2 : i32
    %62 = arith.cmpi eq, %arg0, %c2_i32 : i32
    %63 = arith.extui %62 : i1 to i32
    %c0_i32_31 = arith.constant 0 : i32
    %64 = arith.cmpi ne, %63, %c0_i32_31 : i32
    scf.if %64 {
      %c0_32 = arith.constant 0 : index
      %c0_33 = arith.constant 0 : index
      %65 = vector.load %arg9[%c0_32, %c0_33] : memref<128x1xf32, #tpu.memory_space<vmem>>, vector<128x1xf32>
      %cst_34 = arith.constant 1.000000e-30 : f32
      %66 = vector.broadcast %cst_34 : f32 to vector<128x1xf32>
      %67 = arith.maximumf %65, %66 : vector<128x1xf32>
      %c0_35 = arith.constant 0 : index
      %c0_36 = arith.constant 0 : index
      %68 = vector.load %arg10[%c0_35, %c0_36] : memref<128x128xf32, #tpu.memory_space<vmem>>, vector<128x128xf32>
      %69 = tpu.reciprocal %67 : vector<128x1xf32> -> vector<128x1xf32>
      %70 = vector.broadcast %69 : vector<128x1xf32> to vector<128x128xf32>
      %71 = arith.mulf %68, %70 : vector<128x128xf32>
      %c0_37 = arith.constant 0 : index
      %c0_38 = arith.constant 0 : index
      %72 = vector.load %arg6[%c0_37, %c0_38] : memref<128x128xf32, #tpu.memory_space<vmem>>, vector<128x128xf32>
      %cst_39 = arith.constant dense<0.000000e+00> : vector<128x128xf32>
      %73 = tpu.matmul %71, %72, %cst_39 {dimension_numbers = #tpu.dot_dimension_numbers<[1], [0], [0], [1], [0, 0, 1, 1], [], []>} : vector<128x128xf32>, vector<128x128xf32>, vector<128x128xf32> -> vector<128x128xf32>
      %74 = math.tanh %73 : vector<128x128xf32>
      %c0_40 = arith.constant 0 : index
      %c0_41 = arith.constant 0 : index
      %75 = vector.load %arg7[%c0_40, %c0_41] : memref<128x128xf32, #tpu.memory_space<vmem>>, vector<128x128xf32>
      tpu.vector_store %arg7[%c0_40, %c0_41], %74 {strides = array<i32>} : memref<128x128xf32, #tpu.memory_space<vmem>>, vector<128x128xf32>,
    } else {
    }
    return
  }
  func.func @transform_0(%arg0: i32) -> (i32, i32) {
    %c0_i32 = arith.constant 0 : i32
    %c0_i32_0 = arith.constant 0 : i32
    return %c0_i32, %arg0 : i32, i32
  }
  func.func @transform_1(%arg0: i32) -> (i32, i32) {
    %c0_i32 = arith.constant 0 : i32
    %c0_i32_0 = arith.constant 0 : i32
    return %c0_i32, %arg0 : i32, i32
  }
  func.func @transform_2(%arg0: i32) -> (i32, i32) {
    %c0_i32 = arith.constant 0 : i32
    %c0_i32_0 = arith.constant 0 : i32
    return %c0_i32, %arg0 : i32, i32
  }
  func.func @transform_3(%arg0: i32) -> (i32, i32) {
    %c0_i32 = arith.constant 0 : i32
    %c0_i32_0 = arith.constant 0 : i32
    %c0_i32_1 = arith.constant 0 : i32
    return %c0_i32, %c0_i32_0 : i32, i32
  }
  func.func @transform_4(%arg0: i32) -> (i32, i32) {
    %c0_i32 = arith.constant 0 : i32
    %c0_i32_0 = arith.constant 0 : i32
    %c0_i32_1 = arith.constant 0 : i32
    return %c0_i32, %c0_i32_0 : i32, i32
  }
  func.func @transform_5(%arg0: i32) -> (i32, i32) {
    %c0_i32 = arith.constant 0 : i32
    %c0_i32_0 = arith.constant 0 : i32
    %c0_i32_1 = arith.constant 0 : i32
    return %c0_i32, %c0_i32_0 : i32, i32
  }
  func.func @transform_6(%arg0: i32) -> (i32, i32) {
    %c0_i32 = arith.constant 0 : i32
    %c0_i32_0 = arith.constant 0 : i32
    %c0_i32_1 = arith.constant 0 : i32
    return %c0_i32, %c0_i32_0 : i32, i32
  }
}

</mosaic_0001>

<llo_original>
// kernel: tpu_custom_call.1
$region0: #{tpu_custom_call.1}
  #allocation0 [shape = 'u32[]', space=smem, size = 0x4, offset = 0x4, fixed_abs, tag = 'smem constant byte address 0x4 - core index']
  #allocation1 [shape = 'u32[72,128]{1,0:T(1,128)}', space=vmem, size = 0x9000, scoped, tag = 'internal scratch']
  #allocation2 [shape = 'f32[128,1]{1,0:T(8,128)}', space=vmem, size = 0x10000, scoped, tag = 'scratch operand']
  #allocation3 [shape = 'f32[128,1]{1,0:T(8,128)}', space=vmem, size = 0x10000, scoped, tag = 'scratch operand']
  #allocation4 [shape = 'f32[128,128]{1,0:T(8,128)}', space=vmem, size = 0x10000, scoped, tag = 'scratch operand']
  %s0 = inlined_call_operand.hbm [shape: s32[1,768], index: 0, kind: input, shape index: {}]
  %s1 = inlined_call_operand.hbm [shape: s32[1,768], index: 1, kind: input, shape index: {}]
  %s2 = inlined_call_operand.hbm [shape: s32[1,768], index: 2, kind: input, shape index: {}]
  %s3 = inlined_call_operand.hbm [shape: f32[128,128], index: 3, kind: input, shape index: {}]
  %s4 = inlined_call_operand.hbm [shape: f32[128,128], index: 4, kind: input, shape index: {}]
  %s5 = inlined_call_operand.hbm [shape: f32[128,128], index: 5, kind: input, shape index: {}]
  %s6 = inlined_call_operand.hbm [shape: f32[128,128], index: 6, kind: output, shape index: {}]
  %s7 = sld [smem:[#allocation0]]
  $region89: #{tpu_custom_call.1} parent=0
    _
  %s9 = ssub.s32 1, %s7
  %s10 = scalar_select 0, %s9, %s7
  $region1: #{tpu_custom_call.1} parent=0
    #allocation5 [shape = 'u8[2048]{0}', space=vmem, size = 0x800, scoped, tag = 'input window, operand 0']
    #allocation6 [shape = 's32[2]{0}', space=sflag, size = 0x8, scoped, tag = 'scoped memory for tpu_custom_call.1']
    #allocation7 [shape = 's32[2]{0}', space=sflag, size = 0x8, scoped, tag = 'scoped memory for tpu_custom_call.1']
    #allocation8 [shape = 'u8[2048]{0}', space=vmem, size = 0x800, scoped, tag = 'input window, operand 1']
    #allocation9 [shape = 's32[2]{0}', space=sflag, size = 0x8, scoped, tag = 'scoped memory for tpu_custom_call.1']
    #allocation10 [shape = 'u8[2048]{0}', space=vmem, size = 0x800, scoped, tag = 'input window, operand 2']
    #allocation11 [shape = 'u8[65536]{0}', space=vmem, size = 0x10000, scoped, tag = 'input window, operand 3, single buffered']
    #allocation12 [shape = 's32[1]{0}', space=sflag, size = 0x4, scoped, tag = 'scoped memory for tpu_custom_call.1']
    #allocation13 [shape = 'u8[65536]{0}', space=vmem, size = 0x10000, scoped, tag = 'input window, operand 4, single buffered']
    #allocation14 [shape = 'u8[65536]{0}', space=vmem, size = 0x10000, scoped, tag = 'input window, operand 5, single buffered']
    #allocation15 [shape = 's32[1]{0}', space=sflag, size = 0x4, scoped, tag = 'scoped memory for tpu_custom_call.1']
    #allocation16 [shape = 'u8[65536]{0}', space=vmem, size = 0x10000, scoped, tag = 'output window, operand 0, single buffered']
    %11 = vsyncpa [#allocation6], 0
    %s12 = scalar_lea.sflag [#allocation6], 1
    %13 = vsyncpa %s12, 0
    %14 = vsyncpa [#allocation9], 0
    %s15 = scalar_lea.sflag [#allocation9], 1
    %16 = vsyncpa %s15, 0
    %17 = vsyncpa [#allocation12], 0
    %18 = vsyncpa [#allocation15], 0
    %19 = vsyncpa [#allocation7], 0
    loop: start=0, step=1, limit=5
    $region2: #{tpu_custom_call.1} parent=1 // loop_pre_header
      _
    $region3: #{tpu_custom_call.1} parent=1 // loop_header
      %s21 = sphi 0, %s25
      %p22 = scmp.ge.s32.totalorder %s21, 5
      %s31 = sphi 0, %s33
      %s34 = sphi 0, %s31
      %s35 = sphi 0, %s34
      %s51 = sphi 0, %s35
      %s57 = sphi 0, %s59
      %s60 = sphi 0, %s57
      %s61 = sphi 0, %s60
      %s77 = sphi 0, %s61
      %s83 = sphi 0, %s85
      %s86 = sphi 0, %s83
      %s87 = sphi 0, %s86
      %s103 = sphi 0, %s87
      %s107 = sphi 0, %s107
      %s109 = sphi 0, %s107
      %s110 = sphi 0, %s109
      %s124 = sphi 0, %s110
      %s128 = sphi 0, %s128
      %s130 = sphi 0, %s128
      %s131 = sphi 0, %s130
      %s145 = sphi 0, %s131
      %s149 = sphi 0, %s149
      %s151 = sphi 0, %s149
      %s152 = sphi 0, %s151
      %s166 = sphi 0, %s152
      %s170 = sphi 0, %s170
      %s172 = sphi 0, %s170
      %s173 = sphi 0, %s172
      %s187 = sphi 0, %s173
    $region4: #{tpu_custom_call.1} parent=1 // loop_header_branch
      %24 = sbr.rel (%p22) target = $region8
    $region5: #{tpu_custom_call.1} parent=1 // loop_body
      %s26 = ssub.s32 %s21, 1
      %s27 = ssub.s32 %s21, 2
      %s28 = sadd.s32 %s21, 1
      %s29 = ssub.s32 %s21, %s28
      %p30 = scmp.eq.s32.totalorder %s29, 0
      %s32 = sadd.s32 %s31, 1
      %s33 = scalar_select %p30, %s31, %s32
      %p36 = pneg %p30
      %p37 = scmp.eq.s32.totalorder %s21, 2
      %p38 = por %p36, %p37
      %p39 = scmp.ne.s32.totalorder %s31, %s34
      %p40 = scmp.eq.s32.totalorder %s21, 0
      %p41 = por %p39, %p40
      %p42 = scmp.ne.s32.totalorder %s31, %s34
      %p43 = scmp.eq.s32.totalorder %s26, 2
      %p44 = por %p42, %p43
      %p45 = scmp.ne.s32.totalorder %s34, %s35
      %p46 = scmp.eq.s32.totalorder %s26, 0
      %p47 = por %p45, %p46
      %p48 = scmp.ne.s32.totalorder %s34, %s35
      %p49 = scmp.eq.s32.totalorder %s27, 2
      %p50 = por %p48, %p49
      %p52 = scmp.ne.s32.totalorder %s35, %s51
      %p53 = scmp.eq.s32.totalorder %s27, 0
      %p54 = por %p52, %p53
      %s55 = ssub.s32 %s21, %s28
      %p56 = scmp.eq.s32.totalorder %s55, 0
      %s58 = sadd.s32 %s57, 1
      %s59 = scalar_select %p56, %s57, %s58
      %p62 = pneg %p56
      %p63 = scmp.eq.s32.totalorder %s21, 2
      %p64 = por %p62, %p63
      %p65 = scmp.ne.s32.totalorder %s57, %s60
      %p66 = scmp.eq.s32.totalorder %s21, 0
      %p67 = por %p65, %p66
      %p68 = scmp.ne.s32.totalorder %s57, %s60
      %p69 = scmp.eq.s32.totalorder %s26, 2
      %p70 = por %p68, %p69
      %p71 = scmp.ne.s32.totalorder %s60, %s61
      %p72 = scmp.eq.s32.totalorder %s26, 0
      %p73 = por %p71, %p72
      %p74 = scmp.ne.s32.totalorder %s60, %s61
      %p75 = scmp.eq.s32.totalorder %s27, 2
      %p76 = por %p74, %p75
      %p78 = scmp.ne.s32.totalorder %s61, %s77
      %p79 = scmp.eq.s32.totalorder %s27, 0
      %p80 = por %p78, %p79
      %s81 = ssub.s32 %s21, %s28
      %p82 = scmp.eq.s32.totalorder %s81, 0
      %s84 = sadd.s32 %s83, 1
      %s85 = scalar_select %p82, %s83, %s84
      %p88 = pneg %p82
      %p89 = scmp.eq.s32.totalorder %s21, 2
      %p90 = por %p88, %p89
      %p91 = scmp.ne.s32.totalorder %s83, %s86
      %p92 = scmp.eq.s32.totalorder %s21, 0
      %p93 = por %p91, %p92
      %p94 = scmp.ne.s32.totalorder %s83, %s86
      %p95 = scmp.eq.s32.totalorder %s26, 2
      %p96 = por %p94, %p95
      %p97 = scmp.ne.s32.totalorder %s86, %s87
      %p98 = scmp.eq.s32.totalorder %s26, 0
      %p99 = por %p97, %p98
      %p100 = scmp.ne.s32.totalorder %s86, %s87
      %p101 = scmp.eq.s32.totalorder %s27, 2
      %p102 = por %p100, %p101
      %p104 = scmp.ne.s32.totalorder %s87, %s103
      %p105 = scmp.eq.s32.totalorder %s27, 0
      %p106 = por %p104, %p105
      %s108 = sadd.s32 %s107, 1
      %p111 = scmp.eq.s32.totalorder %s21, 2
      %p112 = scmp.ne.s32.totalorder %s107, %s109
      %p113 = scmp.eq.s32.totalorder %s21, 0
      %p114 = por %p112, %p113
      %p115 = scmp.ne.s32.totalorder %s107, %s109
      %p116 = scmp.eq.s32.totalorder %s26, 2
      %p117 = por %p115, %p116
      %p118 = scmp.ne.s32.totalorder %s109, %s110
      %p119 = scmp.eq.s32.totalorder %s26, 0
      %p120 = por %p118, %p119
      %p121 = scmp.ne.s32.totalorder %s109, %s110
      %p122 = scmp.eq.s32.totalorder %s27, 2
      %p123 = por %p121, %p122
      %p125 = scmp.ne.s32.totalorder %s110, %s124
      %p126 = scmp.eq.s32.totalorder %s27, 0
      %p127 = por %p125, %p126
      %s129 = sadd.s32 %s128, 1
      %p132 = scmp.eq.s32.totalorder %s21, 2
      %p133 = scmp.ne.s32.totalorder %s128, %s130
      %p134 = scmp.eq.s32.totalorder %s21, 0
      %p135 = por %p133, %p134
      %p136 = scmp.ne.s32.totalorder %s128, %s130
      %p137 = scmp.eq.s32.totalorder %s26, 2
      %p138 = por %p136, %p137
      %p139 = scmp.ne.s32.totalorder %s130, %s131
      %p140 = scmp.eq.s32.totalorder %s26, 0
      %p141 = por %p139, %p140
      %p142 = scmp.ne.s32.totalorder %s130, %s131
      %p143 = scmp.eq.s32.totalorder %s27, 2
      %p144 = por %p142, %p143
      %p146 = scmp.ne.s32.totalorder %s131, %s145
      %p147 = scmp.eq.s32.totalorder %s27, 0
      %p148 = por %p146, %p147
      %s150 = sadd.s32 %s149, 1
      %p153 = scmp.eq.s32.totalorder %s21, 2
      %p154 = scmp.ne.s32.totalorder %s149, %s151
      %p155 = scmp.eq.s32.totalorder %s21, 0
      %p156 = por %p154, %p155
      %p157 = scmp.ne.s32.totalorder %s149, %s151
      %p158 = scmp.eq.s32.totalorder %s26, 2
      %p159 = por %p157, %p158
      %p160 = scmp.ne.s32.totalorder %s151, %s152
      %p161 = scmp.eq.s32.totalorder %s26, 0
      %p162 = por %p160, %p161
      %p163 = scmp.ne.s32.totalorder %s151, %s152
      %p164 = scmp.eq.s32.totalorder %s27, 2
      %p165 = por %p163, %p164
      %p167 = scmp.ne.s32.totalorder %s152, %s166
      %p168 = scmp.eq.s32.totalorder %s27, 0
      %p169 = por %p167, %p168
      %s171 = sadd.s32 %s170, 1
      %p174 = scmp.eq.s32.totalorder %s21, 2
      %p175 = scmp.ne.s32.totalorder %s170, %s172
      %p176 = scmp.eq.s32.totalorder %s21, 0
      %p177 = por %p175, %p176
      %p178 = scmp.ne.s32.totalorder %s170, %s172
      %p179 = scmp.eq.s32.totalorder %s26, 2
      %p180 = por %p178, %p179
      %p181 = scmp.ne.s32.totalorder %s172, %s173
      %p182 = scmp.eq.s32.totalorder %s26, 0
      %p183 = por %p181, %p182
      %p184 = scmp.ne.s32.totalorder %s172, %s173
      %p185 = scmp.eq.s32.totalorder %s27, 2
      %p186 = por %p184, %p185
      %p188 = scmp.ne.s32.totalorder %s173, %s187
      %p189 = scmp.eq.s32.totalorder %s27, 0
      %p190 = por %p188, %p189
      %p191 = scmp.le.s32.totalorder 1, %s21
      %p192 = scmp.lt.s32.totalorder %s21, 4
      %p193 = pnand %p191, %p192
      %p194 = pneg %p193
      // Predicated region
      $region9: #{tpu_custom_call.1} parent=5 // pred_check
        _
      $region10: #{tpu_custom_call.1} parent=5 // pred_check_branch
        %196 = sbr.rel (%p193) target = $region12
      $region11: #{tpu_custom_call.1} parent=5 // pred_region
        %s197 = ssub.s32 %s21, 1
        // Predicated region
        $region13: #{tpu_custom_call.1} parent=11 // pred_check
          %p198 = pneg %p120
        $region14: #{tpu_custom_call.1} parent=11 // pred_check_branch
          %200 = sbr.rel (%p198) target = $region16
        $region15: #{tpu_custom_call.1} parent=11 // pred_region
          %202 = vsyncadd [#allocation12], 0
          %s203 = sshll.u32 %s3, 4
          %s204 = int_to_ptr.hbm [resolvable:$true] %s203
          %s205 = sshll.u32 [#allocation11], 4
          %s206 = int_to_ptr.vmem [resolvable:$true] %s205
          %211 = dma.hbm_to_vmem [thread:$0]  %s204, 2048, %s206, [#allocation12], 128, 128, 8
        $region16: #{tpu_custom_call.1} parent=11 // pred_fallthru
          _
        // Predicated region
        $region17: #{tpu_custom_call.1} parent=11 // pred_check
          %p212 = pneg %p141
        $region18: #{tpu_custom_call.1} parent=11 // pred_check_branch
          %214 = sbr.rel (%p212) target = $region20
        $region19: #{tpu_custom_call.1} parent=11 // pred_region
          %216 = vsyncadd [#allocation12], 0
          %s217 = sshll.u32 %s4, 4
          %s218 = int_to_ptr.hbm [resolvable:$true] %s217
          %s219 = sshll.u32 [#allocation13], 4
          %s220 = int_to_ptr.vmem [resolvable:$true] %s219
          %225 = dma.hbm_to_vmem [thread:$0]  %s218, 2048, %s220, [#allocation12], 128, 128, 8
        $region20: #{tpu_custom_call.1} parent=11 // pred_fallthru
          _
        // Predicated region
        $region21: #{tpu_custom_call.1} parent=11 // pred_check
          %p226 = pneg %p162
        $region22: #{tpu_custom_call.1} parent=11 // pred_check_branch
          %228 = sbr.rel (%p226) target = $region24
        $region23: #{tpu_custom_call.1} parent=11 // pred_region
          %230 = vsyncadd [#allocation15], 0
          %s231 = sshll.u32 %s5, 4
          %s232 = int_to_ptr.hbm [resolvable:$true] %s231
          %s233 = sshll.u32 [#allocation14], 4
          %s234 = int_to_ptr.vmem [resolvable:$true] %s233
          %239 = dma.hbm_to_vmem [thread:$0]  %s232, 2048, %s234, [#allocation15], 128, 128, 8
        $region24: #{tpu_custom_call.1} parent=11 // pred_fallthru
          _
      $region12: #{tpu_custom_call.1} parent=5 // pred_fallthru
        _
      %p240 = scmp.lt.s32.totalorder %s21, 3
      // Predicated region
      $region25: #{tpu_custom_call.1} parent=5 // pred_check
        %p241 = pneg %p240
      $region26: #{tpu_custom_call.1} parent=5 // pred_check_branch
        %243 = sbr.rel (%p241) target = $region28
      $region27: #{tpu_custom_call.1} parent=5 // pred_region
        // Predicated region
        $region29: #{tpu_custom_call.1} parent=27 // pred_check
          %p244 = pneg %p41
        $region30: #{tpu_custom_call.1} parent=27 // pred_check_branch
          %246 = sbr.rel (%p244) target = $region32
        $region31: #{tpu_custom_call.1} parent=27 // pred_region
          %s247 = sand.u32 %s31, 1
          %s248 = scalar_lea.sflag [#allocation6], %s247
          %s249 = sand.u32 %s31, 1
          %s250 = smul.addr %s249, 2
          %s251 = scalar_lea.vmem [#allocation5], %s250
          %s252 = smul.u32 2, %s21
          %254 = vsyncadd %s248, 0
          %s255 = scalar_lea.hbm %s0, %s252
          %s257 = sshll.u32 %s255, 4
          %s258 = int_to_ptr.hbm [resolvable:$true] %s257
          %s259 = sshll.u32 %s251, 4
          %s260 = int_to_ptr.vmem [resolvable:$true] %s259
          %262 = dma.hbm_to_vmem [thread:$0]  %s258, 32, %s260, %s248
        $region32: #{tpu_custom_call.1} parent=27 // pred_fallthru
          _
        // Predicated region
        $region33: #{tpu_custom_call.1} parent=27 // pred_check
          %p263 = pneg %p67
        $region34: #{tpu_custom_call.1} parent=27 // pred_check_branch
          %265 = sbr.rel (%p263) target = $region36
        $region35: #{tpu_custom_call.1} parent=27 // pred_region
          %s266 = sand.u32 %s21, 1
          %s267 = scalar_lea.sflag [#allocation9], %s266
          %s268 = sand.u32 %s57, 1
          %s269 = smul.addr %s268, 2
          %s270 = scalar_lea.vmem [#allocation8], %s269
          %s271 = smul.u32 2, %s21
          %273 = vsyncadd %s267, 0
          %s274 = scalar_lea.hbm %s1, %s271
          %s276 = sshll.u32 %s274, 4
          %s277 = int_to_ptr.hbm [resolvable:$true] %s276
          %s278 = sshll.u32 %s270, 4
          %s279 = int_to_ptr.vmem [resolvable:$true] %s278
          %281 = dma.hbm_to_vmem [thread:$0]  %s277, 32, %s279, %s267
        $region36: #{tpu_custom_call.1} parent=27 // pred_fallthru
          _
        // Predicated region
        $region37: #{tpu_custom_call.1} parent=27 // pred_check
          %p282 = pneg %p93
        $region38: #{tpu_custom_call.1} parent=27 // pred_check_branch
          %284 = sbr.rel (%p282) target = $region40
        $region39: #{tpu_custom_call.1} parent=27 // pred_region
          %s285 = sand.u32 %s21, 1
          %s286 = scalar_lea.sflag [#allocation9], %s285
          %s287 = sand.u32 %s83, 1
          %s288 = smul.addr %s287, 2
          %s289 = scalar_lea.vmem [#allocation10], %s288
          %s290 = smul.u32 2, %s21
          %292 = vsyncadd %s286, 0
          %s293 = scalar_lea.hbm %s2, %s290
          %s295 = sshll.u32 %s293, 4
          %s296 = int_to_ptr.hbm [resolvable:$true] %s295
          %s297 = sshll.u32 %s289, 4
          %s298 = int_to_ptr.vmem [resolvable:$true] %s297
          %300 = dma.hbm_to_vmem [thread:$0]  %s296, 32, %s298, %s286
        $region40: #{tpu_custom_call.1} parent=27 // pred_fallthru
          _
      $region28: #{tpu_custom_call.1} parent=5 // pred_fallthru
        _
      %p301 = scmp.le.s32.totalorder 1, %s21
      %p302 = scmp.lt.s32.totalorder %s21, 4
      %p303 = pnand %p301, %p302
      %p304 = pneg %p303
      // Predicated region
      $region41: #{tpu_custom_call.1} parent=5 // pred_check
        _
      $region42: #{tpu_custom_call.1} parent=5 // pred_check_branch
        %306 = sbr.rel (%p303) target = $region44
      $region43: #{tpu_custom_call.1} parent=5 // pred_region
        %s307 = ssub.s32 %s21, 1
        %s308 = sand.u32 %s34, 1
        %s309 = scalar_lea.sflag [#allocation6], %s308
        %s310 = sand.u32 %s34, 1
        %s311 = smul.addr %s310, 2
        %s312 = scalar_lea.vmem [#allocation5], %s311
        // Predicated region
        $region45: #{tpu_custom_call.1} parent=43 // pred_check
          %p313 = pneg %p47
        $region46: #{tpu_custom_call.1} parent=43 // pred_check_branch
          %315 = sbr.rel (%p313) target = $region48
        $region47: #{tpu_custom_call.1} parent=43 // pred_region
          %317 = dma.done %s309, 32
        $region48: #{tpu_custom_call.1} parent=43 // pred_fallthru
          _
        %s318 = sand.u32 %s26, 1
        %s319 = scalar_lea.sflag [#allocation9], %s318
        %s320 = sand.u32 %s60, 1
        %s321 = smul.addr %s320, 2
        %s322 = scalar_lea.vmem [#allocation8], %s321
        // Predicated region
        $region49: #{tpu_custom_call.1} parent=43 // pred_check
          %p323 = pneg %p73
        $region50: #{tpu_custom_call.1} parent=43 // pred_check_branch
          %325 = sbr.rel (%p323) target = $region52
        $region51: #{tpu_custom_call.1} parent=43 // pred_region
          %327 = dma.done %s319, 32
        $region52: #{tpu_custom_call.1} parent=43 // pred_fallthru
          _
        %s328 = sand.u32 %s26, 1
        %s329 = scalar_lea.sflag [#allocation9], %s328
        %s330 = sand.u32 %s86, 1
        %s331 = smul.addr %s330, 2
        %s332 = scalar_lea.vmem [#allocation10], %s331
        // Predicated region
        $region53: #{tpu_custom_call.1} parent=43 // pred_check
          %p333 = pneg %p99
        $region54: #{tpu_custom_call.1} parent=43 // pred_check_branch
          %335 = sbr.rel (%p333) target = $region56
        $region55: #{tpu_custom_call.1} parent=43 // pred_region
          %337 = dma.done %s329, 32
        $region56: #{tpu_custom_call.1} parent=43 // pred_fallthru
          _
        // Predicated region
        $region57: #{tpu_custom_call.1} parent=43 // pred_check
          %p338 = pneg %p120
        $region58: #{tpu_custom_call.1} parent=43 // pred_check_branch
          %340 = sbr.rel (%p338) target = $region60
        $region59: #{tpu_custom_call.1} parent=43 // pred_region
          %342 = dma.done [#allocation12], 2048
        $region60: #{tpu_custom_call.1} parent=43 // pred_fallthru
          _
        // Predicated region
        $region61: #{tpu_custom_call.1} parent=43 // pred_check
          %p343 = pneg %p141
        $region62: #{tpu_custom_call.1} parent=43 // pred_check_branch
          %345 = sbr.rel (%p343) target = $region64
        $region63: #{tpu_custom_call.1} parent=43 // pred_region
          %347 = dma.done [#allocation12], 2048
        $region64: #{tpu_custom_call.1} parent=43 // pred_fallthru
          _
        // Predicated region
        $region65: #{tpu_custom_call.1} parent=43 // pred_check
          %p348 = pneg %p162
        $region66: #{tpu_custom_call.1} parent=43 // pred_check_branch
          %350 = sbr.rel (%p348) target = $region68
        $region67: #{tpu_custom_call.1} parent=43 // pred_region
          %352 = dma.done [#allocation15], 2048
        $region68: #{tpu_custom_call.1} parent=43 // pred_fallthru
          _
        %s353 = sand.u32 %s34, 1
        %s354 = scalar_lea.sflag [#allocation6], %s353
        %s355 = sand.u32 %s34, 1
        %s356 = smul.addr %s355, 2
        %s357 = scalar_lea.vmem [#allocation5], %s356
        %p358 = pneg %p47
        %p359 = pneg %p44
        %s360 = sand.u32 %s26, 1
        %s361 = scalar_lea.sflag [#allocation9], %s360
        %s362 = sand.u32 %s60, 1
        %s363 = smul.addr %s362, 2
        %s364 = scalar_lea.vmem [#allocation8], %s363
        %p365 = pneg %p73
        %p366 = pneg %p70
        %s367 = sand.u32 %s26, 1
        %s368 = scalar_lea.sflag [#allocation9], %s367
        %s369 = sand.u32 %s86, 1
        %s370 = smul.addr %s369, 2
        %s371 = scalar_lea.vmem [#allocation10], %s370
        %p372 = pneg %p99
        %p373 = pneg %p96
        %p374 = pneg %p120
        %p375 = pneg %p117
        %p376 = pneg %p141
        %p377 = pneg %p138
        %p378 = pneg %p162
        %p379 = pneg %p159
        %p380 = pneg %p183
        %p381 = pneg %p180
        %s382 = smul.u32 2, %s26
        %s383 = smul.u32 2, %s26
        %s384 = smul.u32 2, %s26
        %p385 = scmp.eq.s32.totalorder %s26, 0
        // Predicated region
        $region69: #{tpu_custom_call.1} parent=43 // pred_check
          %p386 = pneg %p385
        $region70: #{tpu_custom_call.1} parent=43 // pred_check_branch
          %388 = sbr.rel (%p386) target = $region72
        $region71: #{tpu_custom_call.1} parent=43 // pred_region
          %vm389 = vcmask 7168
          %390 = vst.msk [vmem:[#allocation2] sm:$0xff] %vm389, -1e+30
          %391 = vst.msk [vmem:[#allocation2 + $0x8] sm:$0xff] %vm389, -1e+30
          %392 = vst.msk [vmem:[#allocation2 + $0x10] sm:$0xff] %vm389, -1e+30
          %393 = vst.msk [vmem:[#allocation2 + $0x18] sm:$0xff] %vm389, -1e+30
          %394 = vst.msk [vmem:[#allocation2 + $0x20] sm:$0xff] %vm389, -1e+30
          %395 = vst.msk [vmem:[#allocation2 + $0x28] sm:$0xff] %vm389, -1e+30
          %396 = vst.msk [vmem:[#allocation2 + $0x30] sm:$0xff] %vm389, -1e+30
          %397 = vst.msk [vmem:[#allocation2 + $0x38] sm:$0xff] %vm389, -1e+30
          %398 = vst.msk [vmem:[#allocation2 + $0x40] sm:$0xff] %vm389, -1e+30
          %399 = vst.msk [vmem:[#allocation2 + $0x48] sm:$0xff] %vm389, -1e+30
          %400 = vst.msk [vmem:[#allocation2 + $0x50] sm:$0xff] %vm389, -1e+30
          %401 = vst.msk [vmem:[#allocation2 + $0x58] sm:$0xff] %vm389, -1e+30
          %402 = vst.msk [vmem:[#allocation2 + $0x60] sm:$0xff] %vm389, -1e+30
          %403 = vst.msk [vmem:[#allocation2 + $0x68] sm:$0xff] %vm389, -1e+30
          %404 = vst.msk [vmem:[#allocation2 + $0x70] sm:$0xff] %vm389, -1e+30
          %405 = vst.msk [vmem:[#allocation2 + $0x78] sm:$0xff] %vm389, -1e+30
          %406 = vst.msk [vmem:[#allocation3] sm:$0xff] %vm389, 0.0
          %407 = vst.msk [vmem:[#allocation3 + $0x8] sm:$0xff] %vm389, 0.0
          %408 = vst.msk [vmem:[#allocation3 + $0x10] sm:$0xff] %vm389, 0.0
          %409 = vst.msk [vmem:[#allocation3 + $0x18] sm:$0xff] %vm389, 0.0
          %410 = vst.msk [vmem:[#allocation3 + $0x20] sm:$0xff] %vm389, 0.0
          %411 = vst.msk [vmem:[#allocation3 + $0x28] sm:$0xff] %vm389, 0.0
          %412 = vst.msk [vmem:[#allocation3 + $0x30] sm:$0xff] %vm389, 0.0
          %413 = vst.msk [vmem:[#allocation3 + $0x38] sm:$0xff] %vm389, 0.0
          %414 = vst.msk [vmem:[#allocation3 + $0x40] sm:$0xff] %vm389, 0.0
          %415 = vst.msk [vmem:[#allocation3 + $0x48] sm:$0xff] %vm389, 0.0
          %416 = vst.msk [vmem:[#allocation3 + $0x50] sm:$0xff] %vm389, 0.0
          %417 = vst.msk [vmem:[#allocation3 + $0x58] sm:$0xff] %vm389, 0.0
          %418 = vst.msk [vmem:[#allocation3 + $0x60] sm:$0xff] %vm389, 0.0
          %419 = vst.msk [vmem:[#allocation3 + $0x68] sm:$0xff] %vm389, 0.0
          %420 = vst.msk [vmem:[#allocation3 + $0x70] sm:$0xff] %vm389, 0.0
          %421 = vst.msk [vmem:[#allocation3 + $0x78] sm:$0xff] %vm389, 0.0
          %422 = vst [vmem:[#allocation4] sm:$0xff] 0.0
          %423 = vst [vmem:[#allocation4 + $0x8] sm:$0xff] 0.0
          %424 = vst [vmem:[#allocation4 + $0x10] sm:$0xff] 0.0
          %425 = vst [vmem:[#allocation4 + $0x18] sm:$0xff] 0.0
          %426 = vst [vmem:[#allocation4 + $0x20] sm:$0xff] 0.0
          %427 = vst [vmem:[#allocation4 + $0x28] sm:$0xff] 0.0
          %428 = vst [vmem:[#allocation4 + $0x30] sm:$0xff] 0.0
          %429 = vst [vmem:[#allocation4 + $0x38] sm:$0xff] 0.0
          %430 = vst [vmem:[#allocation4 + $0x40] sm:$0xff] 0.0
          %431 = vst [vmem:[#allocation4 + $0x48] sm:$0xff] 0.0
          %432 = vst [vmem:[#allocation4 + $0x50] sm:$0xff] 0.0
          %433 = vst [vmem:[#allocation4 + $0x58] sm:$0xff] 0.0
          %434 = vst [vmem:[#allocation4 + $0x60] sm:$0xff] 0.0
          %435 = vst [vmem:[#allocation4 + $0x68] sm:$0xff] 0.0
          %436 = vst [vmem:[#allocation4 + $0x70] sm:$0xff] 0.0
          %437 = vst [vmem:[#allocation4 + $0x78] sm:$0xff] 0.0
        $region72: #{tpu_custom_call.1} parent=43 // pred_fallthru
          _
        %v438 = vld [vmem:[%s312] sm:$0x3]
        %v439 = vld [vmem:[%s322] sm:$0x3]
        %v440 = vld [vmem:[%s332] sm:$0x3]
        %v441 = vlaneseq
        %v442 = vshrl.u32 %v441, 7
        %v443 = vadd.s32 %v442, 8
        %v444 = vadd.s32 %v442, 16
        %v445 = vadd.s32 %v442, 24
        %v446 = vadd.s32 %v442, 32
        %v447 = vadd.s32 %v442, 40
        %v448 = vadd.s32 %v442, 48
        %v449 = vadd.s32 %v442, 56
        %v450 = vadd.s32 %v442, 64
        %v451 = vadd.s32 %v442, 72
        %v452 = vadd.s32 %v442, 80
        %v453 = vadd.s32 %v442, 88
        %v454 = vadd.s32 %v442, 96
        %v455 = vadd.s32 %v442, 104
        %v456 = vadd.s32 %v442, 112
        %v457 = vadd.s32 %v442, 120
        %v458 = vperm.slane %v438, 0
        %v459 = vperm.slane %v438, 1
        %vm460 = vcmp.eq.s32.totalorder %v442, %v458
        %vm461 = vcmp.eq.s32.totalorder %v442, %v459
        %vm462 = vcmp.eq.s32.totalorder %v443, %v458
        %vm463 = vcmp.eq.s32.totalorder %v443, %v459
        %vm464 = vcmp.eq.s32.totalorder %v444, %v458
        %vm465 = vcmp.eq.s32.totalorder %v444, %v459
        %vm466 = vcmp.eq.s32.totalorder %v445, %v458
        %vm467 = vcmp.eq.s32.totalorder %v445, %v459
        %vm468 = vcmp.eq.s32.totalorder %v446, %v458
        %vm469 = vcmp.eq.s32.totalorder %v446, %v459
        %vm470 = vcmp.eq.s32.totalorder %v447, %v458
        %vm471 = vcmp.eq.s32.totalorder %v447, %v459
        %vm472 = vcmp.eq.s32.totalorder %v448, %v458
        %vm473 = vcmp.eq.s32.totalorder %v448, %v459
        %vm474 = vcmp.eq.s32.totalorder %v449, %v458
        %vm475 = vcmp.eq.s32.totalorder %v449, %v459
        %vm476 = vcmp.eq.s32.totalorder %v450, %v458
        %vm477 = vcmp.eq.s32.totalorder %v450, %v459
        %vm478 = vcmp.eq.s32.totalorder %v451, %v458
        %vm479 = vcmp.eq.s32.totalorder %v451, %v459
        %vm480 = vcmp.eq.s32.totalorder %v452, %v458
        %vm481 = vcmp.eq.s32.totalorder %v452, %v459
        %vm482 = vcmp.eq.s32.totalorder %v453, %v458
        %vm483 = vcmp.eq.s32.totalorder %v453, %v459
        %vm484 = vcmp.eq.s32.totalorder %v454, %v458
        %vm485 = vcmp.eq.s32.totalorder %v454, %v459
        %vm486 = vcmp.eq.s32.totalorder %v455, %v458
        %vm487 = vcmp.eq.s32.totalorder %v455, %v459
        %vm488 = vcmp.eq.s32.totalorder %v456, %v458
        %vm489 = vcmp.eq.s32.totalorder %v456, %v459
        %vm490 = vcmp.eq.s32.totalorder %v457, %v458
        %vm491 = vcmp.eq.s32.totalorder %v457, %v459
        %v492 = vsel %vm460, 1, 0
        %v493 = vsel %vm461, 1, 0
        %v494 = vsel %vm462, 1, 0
        %v495 = vsel %vm463, 1, 0
        %v496 = vsel %vm464, 1, 0
        %v497 = vsel %vm465, 1, 0
        %v498 = vsel %vm466, 1, 0
        %v499 = vsel %vm467, 1, 0
        %v500 = vsel %vm468, 1, 0
        %v501 = vsel %vm469, 1, 0
        %v502 = vsel %vm470, 1, 0
        %v503 = vsel %vm471, 1, 0
        %v504 = vsel %vm472, 1, 0
        %v505 = vsel %vm473, 1, 0
        %v506 = vsel %vm474, 1, 0
        %v507 = vsel %vm475, 1, 0
        %v508 = vsel %vm476, 1, 0
        %v509 = vsel %vm477, 1, 0
        %v510 = vsel %vm478, 1, 0
        %v511 = vsel %vm479, 1, 0
        %v512 = vsel %vm480, 1, 0
        %v513 = vsel %vm481, 1, 0
        %v514 = vsel %vm482, 1, 0
        %v515 = vsel %vm483, 1, 0
        %v516 = vsel %vm484, 1, 0
        %v517 = vsel %vm485, 1, 0
        %v518 = vsel %vm486, 1, 0
        %v519 = vsel %vm487, 1, 0
        %v520 = vsel %vm488, 1, 0
        %v521 = vsel %vm489, 1, 0
        %v522 = vsel %vm490, 1, 0
        %v523 = vsel %vm491, 1, 0
        %v524 = vcvt.s32.f32 %v492
        %v525 = vcvt.s32.f32 %v493
        %v526 = vcvt.s32.f32 %v494
        %v527 = vcvt.s32.f32 %v495
        %v528 = vcvt.s32.f32 %v496
        %v529 = vcvt.s32.f32 %v497
        %v530 = vcvt.s32.f32 %v498
        %v531 = vcvt.s32.f32 %v499
        %v532 = vcvt.s32.f32 %v500
        %v533 = vcvt.s32.f32 %v501
        %v534 = vcvt.s32.f32 %v502
        %v535 = vcvt.s32.f32 %v503
        %v536 = vcvt.s32.f32 %v504
        %v537 = vcvt.s32.f32 %v505
        %v538 = vcvt.s32.f32 %v506
        %v539 = vcvt.s32.f32 %v507
        %v540 = vcvt.s32.f32 %v508
        %v541 = vcvt.s32.f32 %v509
        %v542 = vcvt.s32.f32 %v510
        %v543 = vcvt.s32.f32 %v511
        %v544 = vcvt.s32.f32 %v512
        %v545 = vcvt.s32.f32 %v513
        %v546 = vcvt.s32.f32 %v514
        %v547 = vcvt.s32.f32 %v515
        %v548 = vcvt.s32.f32 %v516
        %v549 = vcvt.s32.f32 %v517
        %v550 = vcvt.s32.f32 %v518
        %v551 = vcvt.s32.f32 %v519
        %v552 = vcvt.s32.f32 %v520
        %v553 = vcvt.s32.f32 %v521
        %v554 = vcvt.s32.f32 %v522
        %v555 = vcvt.s32.f32 %v523
        %v556 = vperm.slane %v439, 0
        %v557 = vperm.slane %v439, 1
        %vm558 = vcmp.eq.s32.totalorder %v442, %v556
        %vm559 = vcmp.eq.s32.totalorder %v442, %v557
        %vm560 = vcmp.eq.s32.totalorder %v443, %v556
        %vm561 = vcmp.eq.s32.totalorder %v443, %v557
        %vm562 = vcmp.eq.s32.totalorder %v444, %v556
        %vm563 = vcmp.eq.s32.totalorder %v444, %v557
        %vm564 = vcmp.eq.s32.totalorder %v445, %v556
        %vm565 = vcmp.eq.s32.totalorder %v445, %v557
        %vm566 = vcmp.eq.s32.totalorder %v446, %v556
        %vm567 = vcmp.eq.s32.totalorder %v446, %v557
        %vm568 = vcmp.eq.s32.totalorder %v447, %v556
        %vm569 = vcmp.eq.s32.totalorder %v447, %v557
        %vm570 = vcmp.eq.s32.totalorder %v448, %v556
        %vm571 = vcmp.eq.s32.totalorder %v448, %v557
        %vm572 = vcmp.eq.s32.totalorder %v449, %v556
        %vm573 = vcmp.eq.s32.totalorder %v449, %v557
        %vm574 = vcmp.eq.s32.totalorder %v450, %v556
        %vm575 = vcmp.eq.s32.totalorder %v450, %v557
        %vm576 = vcmp.eq.s32.totalorder %v451, %v556
        %vm577 = vcmp.eq.s32.totalorder %v451, %v557
        %vm578 = vcmp.eq.s32.totalorder %v452, %v556
        %vm579 = vcmp.eq.s32.totalorder %v452, %v557
        %vm580 = vcmp.eq.s32.totalorder %v453, %v556
        %vm581 = vcmp.eq.s32.totalorder %v453, %v557
        %vm582 = vcmp.eq.s32.totalorder %v454, %v556
        %vm583 = vcmp.eq.s32.totalorder %v454, %v557
        %vm584 = vcmp.eq.s32.totalorder %v455, %v556
        %vm585 = vcmp.eq.s32.totalorder %v455, %v557
        %vm586 = vcmp.eq.s32.totalorder %v456, %v556
        %vm587 = vcmp.eq.s32.totalorder %v456, %v557
        %vm588 = vcmp.eq.s32.totalorder %v457, %v556
        %vm589 = vcmp.eq.s32.totalorder %v457, %v557
        %v590 = vsel %vm558, 1, 0
        %v591 = vsel %vm559, 1, 0
        %v592 = vsel %vm560, 1, 0
        %v593 = vsel %vm561, 1, 0
        %v594 = vsel %vm562, 1, 0
        %v595 = vsel %vm563, 1, 0
        %v596 = vsel %vm564, 1, 0
        %v597 = vsel %vm565, 1, 0
        %v598 = vsel %vm566, 1, 0
        %v599 = vsel %vm567, 1, 0
        %v600 = vsel %vm568, 1, 0
        %v601 = vsel %vm569, 1, 0
        %v602 = vsel %vm570, 1, 0
        %v603 = vsel %vm571, 1, 0
        %v604 = vsel %vm572, 1, 0
        %v605 = vsel %vm573, 1, 0
        %v606 = vsel %vm574, 1, 0
        %v607 = vsel %vm575, 1, 0
        %v608 = vsel %vm576, 1, 0
        %v609 = vsel %vm577, 1, 0
        %v610 = vsel %vm578, 1, 0
        %v611 = vsel %vm579, 1, 0
        %v612 = vsel %vm580, 1, 0
        %v613 = vsel %vm581, 1, 0
        %v614 = vsel %vm582, 1, 0
        %v615 = vsel %vm583, 1, 0
        %v616 = vsel %vm584, 1, 0
        %v617 = vsel %vm585, 1, 0
        %v618 = vsel %vm586, 1, 0
        %v619 = vsel %vm587, 1, 0
        %v620 = vsel %vm588, 1, 0
        %v621 = vsel %vm589, 1, 0
        %v622 = vcvt.s32.f32 %v590
        %v623 = vcvt.s32.f32 %v591
        %v624 = vcvt.s32.f32 %v592
        %v625 = vcvt.s32.f32 %v593
        %v626 = vcvt.s32.f32 %v594
        %v627 = vcvt.s32.f32 %v595
        %v628 = vcvt.s32.f32 %v596
        %v629 = vcvt.s32.f32 %v597
        %v630 = vcvt.s32.f32 %v598
        %v631 = vcvt.s32.f32 %v599
        %v632 = vcvt.s32.f32 %v600
        %v633 = vcvt.s32.f32 %v601
        %v634 = vcvt.s32.f32 %v602
        %v635 = vcvt.s32.f32 %v603
        %v636 = vcvt.s32.f32 %v604
        %v637 = vcvt.s32.f32 %v605
        %v638 = vcvt.s32.f32 %v606
        %v639 = vcvt.s32.f32 %v607
        %v640 = vcvt.s32.f32 %v608
        %v641 = vcvt.s32.f32 %v609
        %v642 = vcvt.s32.f32 %v610
        %v643 = vcvt.s32.f32 %v611
        %v644 = vcvt.s32.f32 %v612
        %v645 = vcvt.s32.f32 %v613
        %v646 = vcvt.s32.f32 %v614
        %v647 = vcvt.s32.f32 %v615
        %v648 = vcvt.s32.f32 %v616
        %v649 = vcvt.s32.f32 %v617
        %v650 = vcvt.s32.f32 %v618
        %v651 = vcvt.s32.f32 %v619
        %v652 = vcvt.s32.f32 %v620
        %v653 = vcvt.s32.f32 %v621
        %v654 = vperm.slane %v440, 0
        %v655 = vperm.slane %v440, 1
        %vm656 = vcmp.eq.s32.totalorder %v442, %v654
        %vm657 = vcmp.eq.s32.totalorder %v442, %v655
        %vm658 = vcmp.eq.s32.totalorder %v443, %v654
        %vm659 = vcmp.eq.s32.totalorder %v443, %v655
        %vm660 = vcmp.eq.s32.totalorder %v444, %v654
        %vm661 = vcmp.eq.s32.totalorder %v444, %v655
        %vm662 = vcmp.eq.s32.totalorder %v445, %v654
        %vm663 = vcmp.eq.s32.totalorder %v445, %v655
        %vm664 = vcmp.eq.s32.totalorder %v446, %v654
        %vm665 = vcmp.eq.s32.totalorder %v446, %v655
        %vm666 = vcmp.eq.s32.totalorder %v447, %v654
        %vm667 = vcmp.eq.s32.totalorder %v447, %v655
        %vm668 = vcmp.eq.s32.totalorder %v448, %v654
        %vm669 = vcmp.eq.s32.totalorder %v448, %v655
        %vm670 = vcmp.eq.s32.totalorder %v449, %v654
        %vm671 = vcmp.eq.s32.totalorder %v449, %v655
        %vm672 = vcmp.eq.s32.totalorder %v450, %v654
        %vm673 = vcmp.eq.s32.totalorder %v450, %v655
        %vm674 = vcmp.eq.s32.totalorder %v451, %v654
        %vm675 = vcmp.eq.s32.totalorder %v451, %v655
        %vm676 = vcmp.eq.s32.totalorder %v452, %v654
        %vm677 = vcmp.eq.s32.totalorder %v452, %v655
        %vm678 = vcmp.eq.s32.totalorder %v453, %v654
        %vm679 = vcmp.eq.s32.totalorder %v453, %v655
        %vm680 = vcmp.eq.s32.totalorder %v454, %v654
        %vm681 = vcmp.eq.s32.totalorder %v454, %v655
        %vm682 = vcmp.eq.s32.totalorder %v455, %v654
        %vm683 = vcmp.eq.s32.totalorder %v455, %v655
        %vm684 = vcmp.eq.s32.totalorder %v456, %v654
        %vm685 = vcmp.eq.s32.totalorder %v456, %v655
        %vm686 = vcmp.eq.s32.totalorder %v457, %v654
        %vm687 = vcmp.eq.s32.totalorder %v457, %v655
        %v688 = vsel %vm656, 1, 0
        %v689 = vsel %vm657, 1, 0
        %v690 = vsel %vm658, 1, 0
        %v691 = vsel %vm659, 1, 0
        %v692 = vsel %vm660, 1, 0
        %v693 = vsel %vm661, 1, 0
        %v694 = vsel %vm662, 1, 0
        %v695 = vsel %vm663, 1, 0
        %v696 = vsel %vm664, 1, 0
        %v697 = vsel %vm665, 1, 0
        %v698 = vsel %vm666, 1, 0
        %v699 = vsel %vm667, 1, 0
        %v700 = vsel %vm668, 1, 0
        %v701 = vsel %vm669, 1, 0
        %v702 = vsel %vm670, 1, 0
        %v703 = vsel %vm671, 1, 0
        %v704 = vsel %vm672, 1, 0
        %v705 = vsel %vm673, 1, 0
        %v706 = vsel %vm674, 1, 0
        %v707 = vsel %vm675, 1, 0
        %v708 = vsel %vm676, 1, 0
        %v709 = vsel %vm677, 1, 0
        %v710 = vsel %vm678, 1, 0
        %v711 = vsel %vm679, 1, 0
        %v712 = vsel %vm680, 1, 0
        %v713 = vsel %vm681, 1, 0
        %v714 = vsel %vm682, 1, 0
        %v715 = vsel %vm683, 1, 0
        %v716 = vsel %vm684, 1, 0
        %v717 = vsel %vm685, 1, 0
        %v718 = vsel %vm686, 1, 0
        %v719 = vsel %vm687, 1, 0
        %v720 = vcvt.s32.f32 %v688
        %v721 = vcvt.s32.f32 %v689
        %v722 = vcvt.s32.f32 %v690
        %v723 = vcvt.s32.f32 %v691
        %v724 = vcvt.s32.f32 %v692
        %v725 = vcvt.s32.f32 %v693
        %v726 = vcvt.s32.f32 %v694
        %v727 = vcvt.s32.f32 %v695
        %v728 = vcvt.s32.f32 %v696
        %v729 = vcvt.s32.f32 %v697
        %v730 = vcvt.s32.f32 %v698
        %v731 = vcvt.s32.f32 %v699
        %v732 = vcvt.s32.f32 %v700
        %v733 = vcvt.s32.f32 %v701
        %v734 = vcvt.s32.f32 %v702
        %v735 = vcvt.s32.f32 %v703
        %v736 = vcvt.s32.f32 %v704
        %v737 = vcvt.s32.f32 %v705
        %v738 = vcvt.s32.f32 %v706
        %v739 = vcvt.s32.f32 %v707
        %v740 = vcvt.s32.f32 %v708
        %v741 = vcvt.s32.f32 %v709
        %v742 = vcvt.s32.f32 %v710
        %v743 = vcvt.s32.f32 %v711
        %v744 = vcvt.s32.f32 %v712
        %v745 = vcvt.s32.f32 %v713
        %v746 = vcvt.s32.f32 %v714
        %v747 = vcvt.s32.f32 %v715
        %v748 = vcvt.s32.f32 %v716
        %v749 = vcvt.s32.f32 %v717
        %v750 = vcvt.s32.f32 %v718
        %v751 = vcvt.s32.f32 %v719
        %v752 = vld [vmem:[#allocation11] sm:$0xff]
        %v753 = vld [vmem:[#allocation11 + $0x8] sm:$0xff]
        %v754 = vld [vmem:[#allocation11 + $0x10] sm:$0xff]
        %v755 = vld [vmem:[#allocation11 + $0x18] sm:$0xff]
        %v756 = vld [vmem:[#allocation11 + $0x20] sm:$0xff]
        %v757 = vld [vmem:[#allocation11 + $0x28] sm:$0xff]
        %v758 = vld [vmem:[#allocation11 + $0x30] sm:$0xff]
        %v759 = vld [vmem:[#allocation11 + $0x38] sm:$0xff]
        %v760 = vld [vmem:[#allocation11 + $0x40] sm:$0xff]
        %v761 = vld [vmem:[#allocation11 + $0x48] sm:$0xff]
        %v762 = vld [vmem:[#allocation11 + $0x50] sm:$0xff]
        %v763 = vld [vmem:[#allocation11 + $0x58] sm:$0xff]
        %v764 = vld [vmem:[#allocation11 + $0x60] sm:$0xff]
        %v765 = vld [vmem:[#allocation11 + $0x68] sm:$0xff]
        %v766 = vld [vmem:[#allocation11 + $0x70] sm:$0xff]
        %v767 = vld [vmem:[#allocation11 + $0x78] sm:$0xff]
        %v768 = vld [vmem:[#allocation13] sm:$0xff]
        %v769 = vld [vmem:[#allocation13 + $0x8] sm:$0xff]
        %v770 = vld [vmem:[#allocation13 + $0x10] sm:$0xff]
        %v771 = vld [vmem:[#allocation13 + $0x18] sm:$0xff]
        %v772 = vld [vmem:[#allocation13 + $0x20] sm:$0xff]
        %v773 = vld [vmem:[#allocation13 + $0x28] sm:$0xff]
        %v774 = vld [vmem:[#allocation13 + $0x30] sm:$0xff]
        %v775 = vld [vmem:[#allocation13 + $0x38] sm:$0xff]
        %v776 = vld [vmem:[#allocation13 + $0x40] sm:$0xff]
        %v777 = vld [vmem:[#allocation13 + $0x48] sm:$0xff]
        %v778 = vld [vmem:[#allocation13 + $0x50] sm:$0xff]
        %v779 = vld [vmem:[#allocation13 + $0x58] sm:$0xff]
        %v780 = vld [vmem:[#allocation13 + $0x60] sm:$0xff]
        %v781 = vld [vmem:[#allocation13 + $0x68] sm:$0xff]
        %v782 = vld [vmem:[#allocation13 + $0x70] sm:$0xff]
        %v783 = vld [vmem:[#allocation13 + $0x78] sm:$0xff]
        %784 = vmatpush.msra.mxu0 %v554
        %785 = vmatpush.msra.mxu0 %v552
        %786 = vmatpush.msra.mxu0 %v550
        %787 = vmatpush.msra.mxu0 %v548
        %788 = vmatpush.msra.mxu0 %v546
        %789 = vmatpush.msra.mxu0 %v544
        %790 = vmatpush.msra.mxu0 %v542
        %791 = vmatpush.msra.mxu0 %v540
        %792 = vmatpush.msra.mxu0 %v538
        %793 = vmatpush.msra.mxu0 %v536
        %794 = vmatpush.msra.mxu0 %v534
        %795 = vmatpush.msra.mxu0 %v532
        %796 = vmatpush.msra.mxu0 %v530
        %797 = vmatpush.msra.mxu0 %v528
        %798 = vmatpush.msra.mxu0 %v526
        %799 = vmatpush.msra.mxu0 %v524
        %800 = vmatmul.f32.gmra.mxu0 %v752
        %v801 = vpop.f32.mrf.mxu0
        %v802 = vadd.f32 0.0, %v801
        %803 = vmatmul.f32.gmra.mxu0 %v753
        %v804 = vpop.f32.mrf.mxu0
        %v805 = vadd.f32 0.0, %v804
        %806 = vmatmul.f32.gmra.mxu0 %v754
        %v807 = vpop.f32.mrf.mxu0
        %v808 = vadd.f32 0.0, %v807
        %809 = vmatmul.f32.gmra.mxu0 %v755
        %v810 = vpop.f32.mrf.mxu0
        %v811 = vadd.f32 0.0, %v810
        %812 = vmatmul.f32.gmra.mxu0 %v756
        %v813 = vpop.f32.mrf.mxu0
        %v814 = vadd.f32 0.0, %v813
        %815 = vmatmul.f32.gmra.mxu0 %v757
        %v816 = vpop.f32.mrf.mxu0
        %v817 = vadd.f32 0.0, %v816
        %818 = vmatmul.f32.gmra.mxu0 %v758
        %v819 = vpop.f32.mrf.mxu0
        %v820 = vadd.f32 0.0, %v819
        %821 = vmatmul.f32.gmra.mxu0 %v759
        %v822 = vpop.f32.mrf.mxu0
        %v823 = vadd.f32 0.0, %v822
        %824 = vmatmul.f32.gmra.mxu0 %v760
        %v825 = vpop.f32.mrf.mxu0
        %v826 = vadd.f32 0.0, %v825
        %827 = vmatmul.f32.gmra.mxu0 %v761
        %v828 = vpop.f32.mrf.mxu0
        %v829 = vadd.f32 0.0, %v828
        %830 = vmatmul.f32.gmra.mxu0 %v762
        %v831 = vpop.f32.mrf.mxu0
        %v832 = vadd.f32 0.0, %v831
        %833 = vmatmul.f32.gmra.mxu0 %v763
        %v834 = vpop.f32.mrf.mxu0
        %v835 = vadd.f32 0.0, %v834
        %836 = vmatmul.f32.gmra.mxu0 %v764
        %v837 = vpop.f32.mrf.mxu0
        %v838 = vadd.f32 0.0, %v837
        %839 = vmatmul.f32.gmra.mxu0 %v765
        %v840 = vpop.f32.mrf.mxu0
        %v841 = vadd.f32 0.0, %v840
        %842 = vmatmul.f32.gmra.mxu0 %v766
        %v843 = vpop.f32.mrf.mxu0
        %v844 = vadd.f32 0.0, %v843
        %845 = vmatmul.f32.gmra.mxu0 %v767
        %v846 = vpop.f32.mrf.mxu0
        %v847 = vadd.f32 0.0, %v846
        %848 = vdwg.mxu0
        %849 = vmatpush.msra.mxu0 %v555
        %850 = vmatpush.msra.mxu0 %v553
        %851 = vmatpush.msra.mxu0 %v551
        %852 = vmatpush.msra.mxu0 %v549
        %853 = vmatpush.msra.mxu0 %v547
        %854 = vmatpush.msra.mxu0 %v545
        %855 = vmatpush.msra.mxu0 %v543
        %856 = vmatpush.msra.mxu0 %v541
        %857 = vmatpush.msra.mxu0 %v539
        %858 = vmatpush.msra.mxu0 %v537
        %859 = vmatpush.msra.mxu0 %v535
        %860 = vmatpush.msra.mxu0 %v533
        %861 = vmatpush.msra.mxu0 %v531
        %862 = vmatpush.msra.mxu0 %v529
        %863 = vmatpush.msra.mxu0 %v527
        %864 = vmatpush.msra.mxu0 %v525
        %865 = vmatmul.f32.gmra.mxu0 %v752
        %v866 = vpop.f32.mrf.mxu0
        %v867 = vadd.f32 0.0, %v866
        %868 = vmatmul.f32.gmra.mxu0 %v753
        %v869 = vpop.f32.mrf.mxu0
        %v870 = vadd.f32 0.0, %v869
        %871 = vmatmul.f32.gmra.mxu0 %v754
        %v872 = vpop.f32.mrf.mxu0
        %v873 = vadd.f32 0.0, %v872
        %874 = vmatmul.f32.gmra.mxu0 %v755
        %v875 = vpop.f32.mrf.mxu0
        %v876 = vadd.f32 0.0, %v875
        %877 = vmatmul.f32.gmra.mxu0 %v756
        %v878 = vpop.f32.mrf.mxu0
        %v879 = vadd.f32 0.0, %v878
        %880 = vmatmul.f32.gmra.mxu0 %v757
        %v881 = vpop.f32.mrf.mxu0
        %v882 = vadd.f32 0.0, %v881
        %883 = vmatmul.f32.gmra.mxu0 %v758
        %v884 = vpop.f32.mrf.mxu0
        %v885 = vadd.f32 0.0, %v884
        %886 = vmatmul.f32.gmra.mxu0 %v759
        %v887 = vpop.f32.mrf.mxu0
        %v888 = vadd.f32 0.0, %v887
        %889 = vmatmul.f32.gmra.mxu0 %v760
        %v890 = vpop.f32.mrf.mxu0
        %v891 = vadd.f32 0.0, %v890
        %892 = vmatmul.f32.gmra.mxu0 %v761
        %v893 = vpop.f32.mrf.mxu0
        %v894 = vadd.f32 0.0, %v893
        %895 = vmatmul.f32.gmra.mxu0 %v762
        %v896 = vpop.f32.mrf.mxu0
        %v897 = vadd.f32 0.0, %v896
        %898 = vmatmul.f32.gmra.mxu0 %v763
        %v899 = vpop.f32.mrf.mxu0
        %v900 = vadd.f32 0.0, %v899
        %901 = vmatmul.f32.gmra.mxu0 %v764
        %v902 = vpop.f32.mrf.mxu0
        %v903 = vadd.f32 0.0, %v902
        %904 = vmatmul.f32.gmra.mxu0 %v765
        %v905 = vpop.f32.mrf.mxu0
        %v906 = vadd.f32 0.0, %v905
        %907 = vmatmul.f32.gmra.mxu0 %v766
        %v908 = vpop.f32.mrf.mxu0
        %v909 = vadd.f32 0.0, %v908
        %910 = vmatmul.f32.gmra.mxu0 %v767
        %v911 = vpop.f32.mrf.mxu0
        %v912 = vadd.f32 0.0, %v911
        %913 = vdwg.mxu0
        %914 = vmatpush.msra.mxu0 %v750
        %915 = vmatpush.msra.mxu0 %v748
        %916 = vmatpush.msra.mxu0 %v746
        %917 = vmatpush.msra.mxu0 %v744
        %918 = vmatpush.msra.mxu0 %v742
        %919 = vmatpush.msra.mxu0 %v740
        %920 = vmatpush.msra.mxu0 %v738
        %921 = vmatpush.msra.mxu0 %v736
        %922 = vmatpush.msra.mxu0 %v734
        %923 = vmatpush.msra.mxu0 %v732
        %924 = vmatpush.msra.mxu0 %v730
        %925 = vmatpush.msra.mxu0 %v728
        %926 = vmatpush.msra.mxu0 %v726
        %927 = vmatpush.msra.mxu0 %v724
        %928 = vmatpush.msra.mxu0 %v722
        %929 = vmatpush.msra.mxu0 %v720
        %930 = vmatmul.f32.gmra.mxu0 %v768
        %v931 = vpop.f32.mrf.mxu0
        %v932 = vadd.f32 0.0, %v931
        %933 = vmatmul.f32.gmra.mxu0 %v769
        %v934 = vpop.f32.mrf.mxu0
        %v935 = vadd.f32 0.0, %v934
        %936 = vmatmul.f32.gmra.mxu0 %v770
        %v937 = vpop.f32.mrf.mxu0
        %v938 = vadd.f32 0.0, %v937
        %939 = vmatmul.f32.gmra.mxu0 %v771
        %v940 = vpop.f32.mrf.mxu0
        %v941 = vadd.f32 0.0, %v940
        %942 = vmatmul.f32.gmra.mxu0 %v772
        %v943 = vpop.f32.mrf.mxu0
        %v944 = vadd.f32 0.0, %v943
        %945 = vmatmul.f32.gmra.mxu0 %v773
        %v946 = vpop.f32.mrf.mxu0
        %v947 = vadd.f32 0.0, %v946
        %948 = vmatmul.f32.gmra.mxu0 %v774
        %v949 = vpop.f32.mrf.mxu0
        %v950 = vadd.f32 0.0, %v949
        %951 = vmatmul.f32.gmra.mxu0 %v775
        %v952 = vpop.f32.mrf.mxu0
        %v953 = vadd.f32 0.0, %v952
        %954 = vmatmul.f32.gmra.mxu0 %v776
        %v955 = vpop.f32.mrf.mxu0
        %v956 = vadd.f32 0.0, %v955
        %957 = vmatmul.f32.gmra.mxu0 %v777
        %v958 = vpop.f32.mrf.mxu0
        %v959 = vadd.f32 0.0, %v958
        %960 = vmatmul.f32.gmra.mxu0 %v778
        %v961 = vpop.f32.mrf.mxu0
        %v962 = vadd.f32 0.0, %v961
        %963 = vmatmul.f32.gmra.mxu0 %v779
        %v964 = vpop.f32.mrf.mxu0
        %v965 = vadd.f32 0.0, %v964
        %966 = vmatmul.f32.gmra.mxu0 %v780
        %v967 = vpop.f32.mrf.mxu0
        %v968 = vadd.f32 0.0, %v967
        %969 = vmatmul.f32.gmra.mxu0 %v781
        %v970 = vpop.f32.mrf.mxu0
        %v971 = vadd.f32 0.0, %v970
        %972 = vmatmul.f32.gmra.mxu0 %v782
        %v973 = vpop.f32.mrf.mxu0
        %v974 = vadd.f32 0.0, %v973
        %975 = vmatmul.f32.gmra.mxu0 %v783
        %v976 = vpop.f32.mrf.mxu0
        %v977 = vadd.f32 0.0, %v976
        %978 = vdwg.mxu0
        %979 = vmatpush.msra.mxu0 %v751
        %980 = vmatpush.msra.mxu0 %v749
        %981 = vmatpush.msra.mxu0 %v747
        %982 = vmatpush.msra.mxu0 %v745
        %983 = vmatpush.msra.mxu0 %v743
        %984 = vmatpush.msra.mxu0 %v741
        %985 = vmatpush.msra.mxu0 %v739
        %986 = vmatpush.msra.mxu0 %v737
        %987 = vmatpush.msra.mxu0 %v735
        %988 = vmatpush.msra.mxu0 %v733
        %989 = vmatpush.msra.mxu0 %v731
        %990 = vmatpush.msra.mxu0 %v729
        %991 = vmatpush.msra.mxu0 %v727
        %992 = vmatpush.msra.mxu0 %v725
        %993 = vmatpush.msra.mxu0 %v723
        %994 = vmatpush.msra.mxu0 %v721
        %995 = vmatmul.f32.gmra.mxu0 %v768
        %v996 = vpop.f32.mrf.mxu0
        %v997 = vadd.f32 0.0, %v996
        %998 = vmatmul.f32.gmra.mxu0 %v769
        %v999 = vpop.f32.mrf.mxu0
        %v1000 = vadd.f32 0.0, %v999
        %1001 = vmatmul.f32.gmra.mxu0 %v770
        %v1002 = vpop.f32.mrf.mxu0
        %v1003 = vadd.f32 0.0, %v1002
        %1004 = vmatmul.f32.gmra.mxu0 %v771
        %v1005 = vpop.f32.mrf.mxu0
        %v1006 = vadd.f32 0.0, %v1005
        %1007 = vmatmul.f32.gmra.mxu0 %v772
        %v1008 = vpop.f32.mrf.mxu0
        %v1009 = vadd.f32 0.0, %v1008
        %1010 = vmatmul.f32.gmra.mxu0 %v773
        %v1011 = vpop.f32.mrf.mxu0
        %v1012 = vadd.f32 0.0, %v1011
        %1013 = vmatmul.f32.gmra.mxu0 %v774
        %v1014 = vpop.f32.mrf.mxu0
        %v1015 = vadd.f32 0.0, %v1014
        %1016 = vmatmul.f32.gmra.mxu0 %v775
        %v1017 = vpop.f32.mrf.mxu0
        %v1018 = vadd.f32 0.0, %v1017
        %1019 = vmatmul.f32.gmra.mxu0 %v776
        %v1020 = vpop.f32.mrf.mxu0
        %v1021 = vadd.f32 0.0, %v1020
        %1022 = vmatmul.f32.gmra.mxu0 %v777
        %v1023 = vpop.f32.mrf.mxu0
        %v1024 = vadd.f32 0.0, %v1023
        %1025 = vmatmul.f32.gmra.mxu0 %v778
        %v1026 = vpop.f32.mrf.mxu0
        %v1027 = vadd.f32 0.0, %v1026
        %1028 = vmatmul.f32.gmra.mxu0 %v779
        %v1029 = vpop.f32.mrf.mxu0
        %v1030 = vadd.f32 0.0, %v1029
        %1031 = vmatmul.f32.gmra.mxu0 %v780
        %v1032 = vpop.f32.mrf.mxu0
        %v1033 = vadd.f32 0.0, %v1032
        %1034 = vmatmul.f32.gmra.mxu0 %v781
        %v1035 = vpop.f32.mrf.mxu0
        %v1036 = vadd.f32 0.0, %v1035
        %1037 = vmatmul.f32.gmra.mxu0 %v782
        %v1038 = vpop.f32.mrf.mxu0
        %v1039 = vadd.f32 0.0, %v1038
        %1040 = vmatmul.f32.gmra.mxu0 %v783
        %v1041 = vpop.f32.mrf.mxu0
        %v1042 = vadd.f32 0.0, %v1041
        %1043 = vdwg.mxu0
        %1044 = vmatpush.msra.mxu0 %v652
        %1045 = vmatpush.msra.mxu0 %v650
        %1046 = vmatpush.msra.mxu0 %v648
        %1047 = vmatpush.msra.mxu0 %v646
        %1048 = vmatpush.msra.mxu0 %v644
        %1049 = vmatpush.msra.mxu0 %v642
        %1050 = vmatpush.msra.mxu0 %v640
        %1051 = vmatpush.msra.mxu0 %v638
        %1052 = vmatpush.msra.mxu0 %v636
        %1053 = vmatpush.msra.mxu0 %v634
        %1054 = vmatpush.msra.mxu0 %v632
        %1055 = vmatpush.msra.mxu0 %v630
        %1056 = vmatpush.msra.mxu0 %v628
        %1057 = vmatpush.msra.mxu0 %v626
        %1058 = vmatpush.msra.mxu0 %v624
        %1059 = vmatpush.msra.mxu0 %v622
        %1060 = vmatmul.f32.gmra.mxu0 %v752
        %v1061 = vpop.f32.mrf.mxu0
        %v1062 = vadd.f32 0.0, %v1061
        %1063 = vmatmul.f32.gmra.mxu0 %v753
        %v1064 = vpop.f32.mrf.mxu0
        %v1065 = vadd.f32 0.0, %v1064
        %1066 = vmatmul.f32.gmra.mxu0 %v754
        %v1067 = vpop.f32.mrf.mxu0
        %v1068 = vadd.f32 0.0, %v1067
        %1069 = vmatmul.f32.gmra.mxu0 %v755
        %v1070 = vpop.f32.mrf.mxu0
        %v1071 = vadd.f32 0.0, %v1070
        %1072 = vmatmul.f32.gmra.mxu0 %v756
        %v1073 = vpop.f32.mrf.mxu0
        %v1074 = vadd.f32 0.0, %v1073
        %1075 = vmatmul.f32.gmra.mxu0 %v757
        %v1076 = vpop.f32.mrf.mxu0
        %v1077 = vadd.f32 0.0, %v1076
        %1078 = vmatmul.f32.gmra.mxu0 %v758
        %v1079 = vpop.f32.mrf.mxu0
        %v1080 = vadd.f32 0.0, %v1079
        %1081 = vmatmul.f32.gmra.mxu0 %v759
        %v1082 = vpop.f32.mrf.mxu0
        %v1083 = vadd.f32 0.0, %v1082
        %1084 = vmatmul.f32.gmra.mxu0 %v760
        %v1085 = vpop.f32.mrf.mxu0
        %v1086 = vadd.f32 0.0, %v1085
        %1087 = vmatmul.f32.gmra.mxu0 %v761
        %v1088 = vpop.f32.mrf.mxu0
        %v1089 = vadd.f32 0.0, %v1088
        %1090 = vmatmul.f32.gmra.mxu0 %v762
        %v1091 = vpop.f32.mrf.mxu0
        %v1092 = vadd.f32 0.0, %v1091
        %1093 = vmatmul.f32.gmra.mxu0 %v763
        %v1094 = vpop.f32.mrf.mxu0
        %v1095 = vadd.f32 0.0, %v1094
        %1096 = vmatmul.f32.gmra.mxu0 %v764
        %v1097 = vpop.f32.mrf.mxu0
        %v1098 = vadd.f32 0.0, %v1097
        %1099 = vmatmul.f32.gmra.mxu0 %v765
        %v1100 = vpop.f32.mrf.mxu0
        %v1101 = vadd.f32 0.0, %v1100
        %1102 = vmatmul.f32.gmra.mxu0 %v766
        %v1103 = vpop.f32.mrf.mxu0
        %v1104 = vadd.f32 0.0, %v1103
        %1105 = vmatmul.f32.gmra.mxu0 %v767
        %v1106 = vpop.f32.mrf.mxu0
        %v1107 = vadd.f32 0.0, %v1106
        %1108 = vdwg.mxu0
        %1109 = vmatpush.msra.mxu0 %v653
        %1110 = vmatpush.msra.mxu0 %v651
        %1111 = vmatpush.msra.mxu0 %v649
        %1112 = vmatpush.msra.mxu0 %v647
        %1113 = vmatpush.msra.mxu0 %v645
        %1114 = vmatpush.msra.mxu0 %v643
        %1115 = vmatpush.msra.mxu0 %v641
        %1116 = vmatpush.msra.mxu0 %v639
        %1117 = vmatpush.msra.mxu0 %v637
        %1118 = vmatpush.msra.mxu0 %v635
        %1119 = vmatpush.msra.mxu0 %v633
        %1120 = vmatpush.msra.mxu0 %v631
        %1121 = vmatpush.msra.mxu0 %v629
        %1122 = vmatpush.msra.mxu0 %v627
        %1123 = vmatpush.msra.mxu0 %v625
        %1124 = vmatpush.msra.mxu0 %v623
        %1125 = vmatmul.f32.gmra.mxu0 %v752
        %v1126 = vpop.f32.mrf.mxu0
        %v1127 = vadd.f32 0.0, %v1126
        %1128 = vmatmul.f32.gmra.mxu0 %v753
        %v1129 = vpop.f32.mrf.mxu0
        %v1130 = vadd.f32 0.0, %v1129
        %1131 = vmatmul.f32.gmra.mxu0 %v754
        %v1132 = vpop.f32.mrf.mxu0
        %v1133 = vadd.f32 0.0, %v1132
        %1134 = vmatmul.f32.gmra.mxu0 %v755
        %v1135 = vpop.f32.mrf.mxu0
        %v1136 = vadd.f32 0.0, %v1135
        %1137 = vmatmul.f32.gmra.mxu0 %v756
        %v1138 = vpop.f32.mrf.mxu0
        %v1139 = vadd.f32 0.0, %v1138
        %1140 = vmatmul.f32.gmra.mxu0 %v757
        %v1141 = vpop.f32.mrf.mxu0
        %v1142 = vadd.f32 0.0, %v1141
        %1143 = vmatmul.f32.gmra.mxu0 %v758
        %v1144 = vpop.f32.mrf.mxu0
        %v1145 = vadd.f32 0.0, %v1144
        %1146 = vmatmul.f32.gmra.mxu0 %v759
        %v1147 = vpop.f32.mrf.mxu0
        %v1148 = vadd.f32 0.0, %v1147
        %1149 = vmatmul.f32.gmra.mxu0 %v760
        %v1150 = vpop.f32.mrf.mxu0
        %v1151 = vadd.f32 0.0, %v1150
        %1152 = vmatmul.f32.gmra.mxu0 %v761
        %v1153 = vpop.f32.mrf.mxu0
        %v1154 = vadd.f32 0.0, %v1153
        %1155 = vmatmul.f32.gmra.mxu0 %v762
        %v1156 = vpop.f32.mrf.mxu0
        %v1157 = vadd.f32 0.0, %v1156
        %1158 = vmatmul.f32.gmra.mxu0 %v763
        %v1159 = vpop.f32.mrf.mxu0
        %v1160 = vadd.f32 0.0, %v1159
        %1161 = vmatmul.f32.gmra.mxu0 %v764
        %v1162 = vpop.f32.mrf.mxu0
        %v1163 = vadd.f32 0.0, %v1162
        %1164 = vmatmul.f32.gmra.mxu0 %v765
        %v1165 = vpop.f32.mrf.mxu0
        %v1166 = vadd.f32 0.0, %v1165
        %1167 = vmatmul.f32.gmra.mxu0 %v766
        %v1168 = vpop.f32.mrf.mxu0
        %v1169 = vadd.f32 0.0, %v1168
        %1170 = vmatmul.f32.gmra.mxu0 %v767
        %v1171 = vpop.f32.mrf.mxu0
        %v1172 = vadd.f32 0.0, %v1171
        %1173 = vdwg.mxu0
        %v1174 = vmul.f32 %v802, %v932
        %v1175 = vmul.f32 %v867, %v997
        %v1176 = vmul.f32 %v805, %v935
        %v1177 = vmul.f32 %v870, %v1000
        %v1178 = vmul.f32 %v808, %v938
        %v1179 = vmul.f32 %v873, %v1003
        %v1180 = vmul.f32 %v811, %v941
        %v1181 = vmul.f32 %v876, %v1006
        %v1182 = vmul.f32 %v814, %v944
        %v1183 = vmul.f32 %v879, %v1009
        %v1184 = vmul.f32 %v817, %v947
        %v1185 = vmul.f32 %v882, %v1012
        %v1186 = vmul.f32 %v820, %v950
        %v1187 = vmul.f32 %v885, %v1015
        %v1188 = vmul.f32 %v823, %v953
        %v1189 = vmul.f32 %v888, %v1018
        %v1190 = vmul.f32 %v826, %v956
        %v1191 = vmul.f32 %v891, %v1021
        %v1192 = vmul.f32 %v829, %v959
        %v1193 = vmul.f32 %v894, %v1024
        %v1194 = vmul.f32 %v832, %v962
        %v1195 = vmul.f32 %v897, %v1027
        %v1196 = vmul.f32 %v835, %v965
        %v1197 = vmul.f32 %v900, %v1030
        %v1198 = vmul.f32 %v838, %v968
        %v1199 = vmul.f32 %v903, %v1033
        %v1200 = vmul.f32 %v841, %v971
        %v1201 = vmul.f32 %v906, %v1036
        %v1202 = vmul.f32 %v844, %v974
        %v1203 = vmul.f32 %v909, %v1039
        %v1204 = vmul.f32 %v847, %v977
        %v1205 = vmul.f32 %v912, %v1042
        %v1206 = vmul.f32 %v1174, %v1062
        %v1207 = vmul.f32 %v1175, %v1127
        %v1208 = vmul.f32 %v1176, %v1065
        %v1209 = vmul.f32 %v1177, %v1130
        %v1210 = vmul.f32 %v1178, %v1068
        %v1211 = vmul.f32 %v1179, %v1133
        %v1212 = vmul.f32 %v1180, %v1071
        %v1213 = vmul.f32 %v1181, %v1136
        %v1214 = vmul.f32 %v1182, %v1074
        %v1215 = vmul.f32 %v1183, %v1139
        %v1216 = vmul.f32 %v1184, %v1077
        %v1217 = vmul.f32 %v1185, %v1142
        %v1218 = vmul.f32 %v1186, %v1080
        %v1219 = vmul.f32 %v1187, %v1145
        %v1220 = vmul.f32 %v1188, %v1083
        %v1221 = vmul.f32 %v1189, %v1148
        %v1222 = vmul.f32 %v1190, %v1086
        %v1223 = vmul.f32 %v1191, %v1151
        %v1224 = vmul.f32 %v1192, %v1089
        %v1225 = vmul.f32 %v1193, %v1154
        %v1226 = vmul.f32 %v1194, %v1092
        %v1227 = vmul.f32 %v1195, %v1157
        %v1228 = vmul.f32 %v1196, %v1095
        %v1229 = vmul.f32 %v1197, %v1160
        %v1230 = vmul.f32 %v1198, %v1098
        %v1231 = vmul.f32 %v1199, %v1163
        %v1232 = vmul.f32 %v1200, %v1101
        %v1233 = vmul.f32 %v1201, %v1166
        %v1234 = vmul.f32 %v1202, %v1104
        %v1235 = vmul.f32 %v1203, %v1169
        %v1236 = vmul.f32 %v1204, %v1107
        %v1237 = vmul.f32 %v1205, %v1172
        %v1238 = vadd.f32 %v1206, %v1208
        %v1239 = vadd.f32 %v1238, %v1210
        %v1240 = vadd.f32 %v1239, %v1212
        %v1241 = vadd.f32 %v1240, %v1214
        %v1242 = vadd.f32 %v1241, %v1216
        %v1243 = vadd.f32 %v1242, %v1218
        %v1244 = vadd.f32 %v1243, %v1220
        %v1245 = vadd.f32 %v1244, %v1222
        %v1246 = vadd.f32 %v1245, %v1224
        %v1247 = vadd.f32 %v1246, %v1226
        %v1248 = vadd.f32 %v1247, %v1228
        %v1249 = vadd.f32 %v1248, %v1230
        %v1250 = vadd.f32 %v1249, %v1232
        %v1251 = vadd.f32 %v1250, %v1234
        %v1252 = vadd.f32 %v1251, %v1236
        %v1253 = vrot.slane %v1252, 4
        %v1254 = vadd.f32 %v1252, %v1253
        %v1255 = vrot.slane %v1254, 2
        %v1256 = vadd.f32 %v1254, %v1255
        %v1257 = vrot.slane %v1256, 1
        %v1258 = vadd.f32 %v1256, %v1257
        %v1259 = vadd.f32 %v1207, %v1209
        %v1260 = vadd.f32 %v1259, %v1211
        %v1261 = vadd.f32 %v1260, %v1213
        %v1262 = vadd.f32 %v1261, %v1215
        %v1263 = vadd.f32 %v1262, %v1217
        %v1264 = vadd.f32 %v1263, %v1219
        %v1265 = vadd.f32 %v1264, %v1221
        %v1266 = vadd.f32 %v1265, %v1223
        %v1267 = vadd.f32 %v1266, %v1225
        %v1268 = vadd.f32 %v1267, %v1227
        %v1269 = vadd.f32 %v1268, %v1229
        %v1270 = vadd.f32 %v1269, %v1231
        %v1271 = vadd.f32 %v1270, %v1233
        %v1272 = vadd.f32 %v1271, %v1235
        %v1273 = vadd.f32 %v1272, %v1237
        %v1274 = vrot.slane %v1273, 4
        %v1275 = vadd.f32 %v1273, %v1274
        %v1276 = vrot.slane %v1275, 2
        %v1277 = vadd.f32 %v1275, %v1276
        %v1278 = vrot.slane %v1277, 1
        %v1279 = vadd.f32 %v1277, %v1278
        %v1280 = vsel %vm558, %v1258, -1e+30
        %v1281 = vsel %vm559, %v1279, -1e+30
        %v1282 = vsel %vm560, %v1258, -1e+30
        %v1283 = vsel %vm561, %v1279, -1e+30
        %v1284 = vsel %vm562, %v1258, -1e+30
        %v1285 = vsel %vm563, %v1279, -1e+30
        %v1286 = vsel %vm564, %v1258, -1e+30
        %v1287 = vsel %vm565, %v1279, -1e+30
        %v1288 = vsel %vm566, %v1258, -1e+30
        %v1289 = vsel %vm567, %v1279, -1e+30
        %v1290 = vsel %vm568, %v1258, -1e+30
        %v1291 = vsel %vm569, %v1279, -1e+30
        %v1292 = vsel %vm570, %v1258, -1e+30
        %v1293 = vsel %vm571, %v1279, -1e+30
        %v1294 = vsel %vm572, %v1258, -1e+30
        %v1295 = vsel %vm573, %v1279, -1e+30
        %v1296 = vsel %vm574, %v1258, -1e+30
        %v1297 = vsel %vm575, %v1279, -1e+30
        %v1298 = vsel %vm576, %v1258, -1e+30
        %v1299 = vsel %vm577, %v1279, -1e+30
        %v1300 = vsel %vm578, %v1258, -1e+30
        %v1301 = vsel %vm579, %v1279, -1e+30
        %v1302 = vsel %vm580, %v1258, -1e+30
        %v1303 = vsel %vm581, %v1279, -1e+30
        %v1304 = vsel %vm582, %v1258, -1e+30
        %v1305 = vsel %vm583, %v1279, -1e+30
        %v1306 = vsel %vm584, %v1258, -1e+30
        %v1307 = vsel %vm585, %v1279, -1e+30
        %v1308 = vsel %vm586, %v1258, -1e+30
        %v1309 = vsel %vm587, %v1279, -1e+30
        %v1310 = vsel %vm588, %v1258, -1e+30
        %v1311 = vsel %vm589, %v1279, -1e+30
        %v1312 = vmax.f32 %v1280, %v1281
        %1313 = vmax.xlane.f32.xlu0 %v1312
        %v1314 = vpop.xlane.xlu0 %1313
        %v1315 = vmax.f32 %v1282, %v1283
        %1316 = vmax.xlane.f32.xlu0 %v1315
        %v1317 = vpop.xlane.xlu0 %1316
        %v1318 = vmax.f32 %v1284, %v1285
        %1319 = vmax.xlane.f32.xlu0 %v1318
        %v1320 = vpop.xlane.xlu0 %1319
        %v1321 = vmax.f32 %v1286, %v1287
        %1322 = vmax.xlane.f32.xlu0 %v1321
        %v1323 = vpop.xlane.xlu0 %1322
        %v1324 = vmax.f32 %v1288, %v1289
        %1325 = vmax.xlane.f32.xlu0 %v1324
        %v1326 = vpop.xlane.xlu0 %1325
        %v1327 = vmax.f32 %v1290, %v1291
        %1328 = vmax.xlane.f32.xlu0 %v1327
        %v1329 = vpop.xlane.xlu0 %1328
        %v1330 = vmax.f32 %v1292, %v1293
        %1331 = vmax.xlane.f32.xlu0 %v1330
        %v1332 = vpop.xlane.xlu0 %1331
        %v1333 = vmax.f32 %v1294, %v1295
        %1334 = vmax.xlane.f32.xlu0 %v1333
        %v1335 = vpop.xlane.xlu0 %1334
        %v1336 = vmax.f32 %v1296, %v1297
        %1337 = vmax.xlane.f32.xlu0 %v1336
        %v1338 = vpop.xlane.xlu0 %1337
        %v1339 = vmax.f32 %v1298, %v1299
        %1340 = vmax.xlane.f32.xlu0 %v1339
        %v1341 = vpop.xlane.xlu0 %1340
        %v1342 = vmax.f32 %v1300, %v1301
        %1343 = vmax.xlane.f32.xlu0 %v1342
        %v1344 = vpop.xlane.xlu0 %1343
        %v1345 = vmax.f32 %v1302, %v1303
        %1346 = vmax.xlane.f32.xlu0 %v1345
        %v1347 = vpop.xlane.xlu0 %1346
        %v1348 = vmax.f32 %v1304, %v1305
        %1349 = vmax.xlane.f32.xlu0 %v1348
        %v1350 = vpop.xlane.xlu0 %1349
        %v1351 = vmax.f32 %v1306, %v1307
        %1352 = vmax.xlane.f32.xlu0 %v1351
        %v1353 = vpop.xlane.xlu0 %1352
        %v1354 = vmax.f32 %v1308, %v1309
        %1355 = vmax.xlane.f32.xlu0 %v1354
        %v1356 = vpop.xlane.xlu0 %1355
        %v1357 = vmax.f32 %v1310, %v1311
        %1358 = vmax.xlane.f32.xlu0 %v1357
        %v1359 = vpop.xlane.xlu0 %1358
        %v1360 = vld [vmem:[#allocation2] sm:$0xff]
        %v1361 = vld [vmem:[#allocation2 + $0x8] sm:$0xff]
        %v1362 = vld [vmem:[#allocation2 + $0x10] sm:$0xff]
        %v1363 = vld [vmem:[#allocation2 + $0x18] sm:$0xff]
        %v1364 = vld [vmem:[#allocation2 + $0x20] sm:$0xff]
        %v1365 = vld [vmem:[#allocation2 + $0x28] sm:$0xff]
        %v1366 = vld [vmem:[#allocation2 + $0x30] sm:$0xff]
        %v1367 = vld [vmem:[#allocation2 + $0x38] sm:$0xff]
        %v1368 = vld [vmem:[#allocation2 + $0x40] sm:$0xff]
        %v1369 = vld [vmem:[#allocation2 + $0x48] sm:$0xff]
        %v1370 = vld [vmem:[#allocation2 + $0x50] sm:$0xff]
        %v1371 = vld [vmem:[#allocation2 + $0x58] sm:$0xff]
        %v1372 = vld [vmem:[#allocation2 + $0x60] sm:$0xff]
        %v1373 = vld [vmem:[#allocation2 + $0x68] sm:$0xff]
        %v1374 = vld [vmem:[#allocation2 + $0x70] sm:$0xff]
        %v1375 = vld [vmem:[#allocation2 + $0x78] sm:$0xff]
        %v1376 = vmax.f32 %v1360, %v1314
        %v1377 = vmax.f32 %v1361, %v1317
        %v1378 = vmax.f32 %v1362, %v1320
        %v1379 = vmax.f32 %v1363, %v1323
        %v1380 = vmax.f32 %v1364, %v1326
        %v1381 = vmax.f32 %v1365, %v1329
        %v1382 = vmax.f32 %v1366, %v1332
        %v1383 = vmax.f32 %v1367, %v1335
        %v1384 = vmax.f32 %v1368, %v1338
        %v1385 = vmax.f32 %v1369, %v1341
        %v1386 = vmax.f32 %v1370, %v1344
        %v1387 = vmax.f32 %v1371, %v1347
        %v1388 = vmax.f32 %v1372, %v1350
        %v1389 = vmax.f32 %v1373, %v1353
        %v1390 = vmax.f32 %v1374, %v1356
        %v1391 = vmax.f32 %v1375, %v1359
        %v1392 = vsub.f32 %v1360, %v1376
        %v1393 = vsub.f32 %v1361, %v1377
        %v1394 = vsub.f32 %v1362, %v1378
        %v1395 = vsub.f32 %v1363, %v1379
        %v1396 = vsub.f32 %v1364, %v1380
        %v1397 = vsub.f32 %v1365, %v1381
        %v1398 = vsub.f32 %v1366, %v1382
        %v1399 = vsub.f32 %v1367, %v1383
        %v1400 = vsub.f32 %v1368, %v1384
        %v1401 = vsub.f32 %v1369, %v1385
        %v1402 = vsub.f32 %v1370, %v1386
        %v1403 = vsub.f32 %v1371, %v1387
        %v1404 = vsub.f32 %v1372, %v1388
        %v1405 = vsub.f32 %v1373, %v1389
        %v1406 = vsub.f32 %v1374, %v1390
        %v1407 = vsub.f32 %v1375, %v1391
        %v1408 = vmul.f32 %v1392, 1.442695
        %v1409 = vpow.pop %v1408
        %v1410 = vmul.f32 %v1393, 1.442695
        %v1411 = vpow.pop %v1410
        %v1412 = vmul.f32 %v1394, 1.442695
        %v1413 = vpow.pop %v1412
        %v1414 = vmul.f32 %v1395, 1.442695
        %v1415 = vpow.pop %v1414
        %v1416 = vmul.f32 %v1396, 1.442695
        %v1417 = vpow.pop %v1416
        %v1418 = vmul.f32 %v1397, 1.442695
        %v1419 = vpow.pop %v1418
        %v1420 = vmul.f32 %v1398, 1.442695
        %v1421 = vpow.pop %v1420
        %v1422 = vmul.f32 %v1399, 1.442695
        %v1423 = vpow.pop %v1422
        %v1424 = vmul.f32 %v1400, 1.442695
        %v1425 = vpow.pop %v1424
        %v1426 = vmul.f32 %v1401, 1.442695
        %v1427 = vpow.pop %v1426
        %v1428 = vmul.f32 %v1402, 1.442695
        %v1429 = vpow.pop %v1428
        %v1430 = vmul.f32 %v1403, 1.442695
        %v1431 = vpow.pop %v1430
        %v1432 = vmul.f32 %v1404, 1.442695
        %v1433 = vpow.pop %v1432
        %v1434 = vmul.f32 %v1405, 1.442695
        %v1435 = vpow.pop %v1434
        %v1436 = vmul.f32 %v1406, 1.442695
        %v1437 = vpow.pop %v1436
        %v1438 = vmul.f32 %v1407, 1.442695
        %v1439 = vpow.pop %v1438
        %1441 = vset.pattern.permute.xlu0 0
        %1442 = vperm.xlu0 %1441, %v1376
        %v1443 = vpop.permute.xlu0 %1442
        %1446 = vset.pattern.permute.xlu0 0
        %1447 = vperm.xlu0 %1446, %v1377
        %v1448 = vpop.permute.xlu0 %1447
        %1451 = vset.pattern.permute.xlu0 0
        %1452 = vperm.xlu0 %1451, %v1378
        %v1453 = vpop.permute.xlu0 %1452
        %1456 = vset.pattern.permute.xlu0 0
        %1457 = vperm.xlu0 %1456, %v1379
        %v1458 = vpop.permute.xlu0 %1457
        %1461 = vset.pattern.permute.xlu0 0
        %1462 = vperm.xlu0 %1461, %v1380
        %v1463 = vpop.permute.xlu0 %1462
        %1466 = vset.pattern.permute.xlu0 0
        %1467 = vperm.xlu0 %1466, %v1381
        %v1468 = vpop.permute.xlu0 %1467
        %1471 = vset.pattern.permute.xlu0 0
        %1472 = vperm.xlu0 %1471, %v1382
        %v1473 = vpop.permute.xlu0 %1472
        %1476 = vset.pattern.permute.xlu0 0
        %1477 = vperm.xlu0 %1476, %v1383
        %v1478 = vpop.permute.xlu0 %1477
        %1481 = vset.pattern.permute.xlu0 0
        %1482 = vperm.xlu0 %1481, %v1384
        %v1483 = vpop.permute.xlu0 %1482
        %1486 = vset.pattern.permute.xlu0 0
        %1487 = vperm.xlu0 %1486, %v1385
        %v1488 = vpop.permute.xlu0 %1487
        %1491 = vset.pattern.permute.xlu0 0
        %1492 = vperm.xlu0 %1491, %v1386
        %v1493 = vpop.permute.xlu0 %1492
        %1496 = vset.pattern.permute.xlu0 0
        %1497 = vperm.xlu0 %1496, %v1387
        %v1498 = vpop.permute.xlu0 %1497
        %1501 = vset.pattern.permute.xlu0 0
        %1502 = vperm.xlu0 %1501, %v1388
        %v1503 = vpop.permute.xlu0 %1502
        %1506 = vset.pattern.permute.xlu0 0
        %1507 = vperm.xlu0 %1506, %v1389
        %v1508 = vpop.permute.xlu0 %1507
        %1511 = vset.pattern.permute.xlu0 0
        %1512 = vperm.xlu0 %1511, %v1390
        %v1513 = vpop.permute.xlu0 %1512
        %1516 = vset.pattern.permute.xlu0 0
        %1517 = vperm.xlu0 %1516, %v1391
        %v1518 = vpop.permute.xlu0 %1517
        %v1520 = vmul.f32 %v622, %v1443
        %v1521 = vmul.f32 %v623, %v1443
        %v1522 = vmul.f32 %v624, %v1448
        %v1523 = vmul.f32 %v625, %v1448
        %v1524 = vmul.f32 %v626, %v1453
        %v1525 = vmul.f32 %v627, %v1453
        %v1526 = vmul.f32 %v628, %v1458
        %v1527 = vmul.f32 %v629, %v1458
        %v1528 = vmul.f32 %v630, %v1463
        %v1529 = vmul.f32 %v631, %v1463
        %v1530 = vmul.f32 %v632, %v1468
        %v1531 = vmul.f32 %v633, %v1468
        %v1532 = vmul.f32 %v634, %v1473
        %v1533 = vmul.f32 %v635, %v1473
        %v1534 = vmul.f32 %v636, %v1478
        %v1535 = vmul.f32 %v637, %v1478
        %v1536 = vmul.f32 %v638, %v1483
        %v1537 = vmul.f32 %v639, %v1483
        %v1538 = vmul.f32 %v640, %v1488
        %v1539 = vmul.f32 %v641, %v1488
        %v1540 = vmul.f32 %v642, %v1493
        %v1541 = vmul.f32 %v643, %v1493
        %v1542 = vmul.f32 %v644, %v1498
        %v1543 = vmul.f32 %v645, %v1498
        %v1544 = vmul.f32 %v646, %v1503
        %v1545 = vmul.f32 %v647, %v1503
        %v1546 = vmul.f32 %v648, %v1508
        %v1547 = vmul.f32 %v649, %v1508
        %v1548 = vmul.f32 %v650, %v1513
        %v1549 = vmul.f32 %v651, %v1513
        %v1550 = vmul.f32 %v652, %v1518
        %v1551 = vmul.f32 %v653, %v1518
        %v1552 = vadd.f32 %v1520, %v1522
        %v1553 = vadd.f32 %v1552, %v1524
        %v1554 = vadd.f32 %v1553, %v1526
        %v1555 = vadd.f32 %v1554, %v1528
        %v1556 = vadd.f32 %v1555, %v1530
        %v1557 = vadd.f32 %v1556, %v1532
        %v1558 = vadd.f32 %v1557, %v1534
        %v1559 = vadd.f32 %v1558, %v1536
        %v1560 = vadd.f32 %v1559, %v1538
        %v1561 = vadd.f32 %v1560, %v1540
        %v1562 = vadd.f32 %v1561, %v1542
        %v1563 = vadd.f32 %v1562, %v1544
        %v1564 = vadd.f32 %v1563, %v1546
        %v1565 = vadd.f32 %v1564, %v1548
        %v1566 = vadd.f32 %v1565, %v1550
        %v1567 = vrot.slane %v1566, 4
        %v1568 = vadd.f32 %v1566, %v1567
        %v1569 = vrot.slane %v1568, 2
        %v1570 = vadd.f32 %v1568, %v1569
        %v1571 = vrot.slane %v1570, 1
        %v1572 = vadd.f32 %v1570, %v1571
        %v1573 = vadd.f32 %v1521, %v1523
        %v1574 = vadd.f32 %v1573, %v1525
        %v1575 = vadd.f32 %v1574, %v1527
        %v1576 = vadd.f32 %v1575, %v1529
        %v1577 = vadd.f32 %v1576, %v1531
        %v1578 = vadd.f32 %v1577, %v1533
        %v1579 = vadd.f32 %v1578, %v1535
        %v1580 = vadd.f32 %v1579, %v1537
        %v1581 = vadd.f32 %v1580, %v1539
        %v1582 = vadd.f32 %v1581, %v1541
        %v1583 = vadd.f32 %v1582, %v1543
        %v1584 = vadd.f32 %v1583, %v1545
        %v1585 = vadd.f32 %v1584, %v1547
        %v1586 = vadd.f32 %v1585, %v1549
        %v1587 = vadd.f32 %v1586, %v1551
        %v1588 = vrot.slane %v1587, 4
        %v1589 = vadd.f32 %v1587, %v1588
        %v1590 = vrot.slane %v1589, 2
        %v1591 = vadd.f32 %v1589, %v1590
        %v1592 = vrot.slane %v1591, 1
        %v1593 = vadd.f32 %v1591, %v1592
        %v1594 = vsub.f32 %v1258, %v1572
        %v1595 = vsub.f32 %v1279, %v1593
        %v1596 = vmul.f32 %v1594, 1.442695
        %v1597 = vpow.pop %v1596
        %v1598 = vmul.f32 %v1595, 1.442695
        %v1599 = vpow.pop %v1598
        %v1600 = vld [vmem:[#allocation3] sm:$0xff]
        %v1601 = vld [vmem:[#allocation3 + $0x8] sm:$0xff]
        %v1602 = vld [vmem:[#allocation3 + $0x10] sm:$0xff]
        %v1603 = vld [vmem:[#allocation3 + $0x18] sm:$0xff]
        %v1604 = vld [vmem:[#allocation3 + $0x20] sm:$0xff]
        %v1605 = vld [vmem:[#allocation3 + $0x28] sm:$0xff]
        %v1606 = vld [vmem:[#allocation3 + $0x30] sm:$0xff]
        %v1607 = vld [vmem:[#allocation3 + $0x38] sm:$0xff]
        %v1608 = vld [vmem:[#allocation3 + $0x40] sm:$0xff]
        %v1609 = vld [vmem:[#allocation3 + $0x48] sm:$0xff]
        %v1610 = vld [vmem:[#allocation3 + $0x50] sm:$0xff]
        %v1611 = vld [vmem:[#allocation3 + $0x58] sm:$0xff]
        %v1612 = vld [vmem:[#allocation3 + $0x60] sm:$0xff]
        %v1613 = vld [vmem:[#allocation3 + $0x68] sm:$0xff]
        %v1614 = vld [vmem:[#allocation3 + $0x70] sm:$0xff]
        %v1615 = vld [vmem:[#allocation3 + $0x78] sm:$0xff]
        %v1616 = vmul.f32 %v1600, %v1409
        %v1617 = vmul.f32 %v1601, %v1411
        %v1618 = vmul.f32 %v1602, %v1413
        %v1619 = vmul.f32 %v1603, %v1415
        %v1620 = vmul.f32 %v1604, %v1417
        %v1621 = vmul.f32 %v1605, %v1419
        %v1622 = vmul.f32 %v1606, %v1421
        %v1623 = vmul.f32 %v1607, %v1423
        %v1624 = vmul.f32 %v1608, %v1425
        %v1625 = vmul.f32 %v1609, %v1427
        %v1626 = vmul.f32 %v1610, %v1429
        %v1627 = vmul.f32 %v1611, %v1431
        %v1628 = vmul.f32 %v1612, %v1433
        %v1629 = vmul.f32 %v1613, %v1435
        %v1630 = vmul.f32 %v1614, %v1437
        %v1631 = vmul.f32 %v1615, %v1439
        %v1632 = vmul.f32 %v622, %v1597
        %v1633 = vmul.f32 %v623, %v1599
        %v1634 = vmul.f32 %v624, %v1597
        %v1635 = vmul.f32 %v625, %v1599
        %v1636 = vmul.f32 %v626, %v1597
        %v1637 = vmul.f32 %v627, %v1599
        %v1638 = vmul.f32 %v628, %v1597
        %v1639 = vmul.f32 %v629, %v1599
        %v1640 = vmul.f32 %v630, %v1597
        %v1641 = vmul.f32 %v631, %v1599
        %v1642 = vmul.f32 %v632, %v1597
        %v1643 = vmul.f32 %v633, %v1599
        %v1644 = vmul.f32 %v634, %v1597
        %v1645 = vmul.f32 %v635, %v1599
        %v1646 = vmul.f32 %v636, %v1597
        %v1647 = vmul.f32 %v637, %v1599
        %v1648 = vmul.f32 %v638, %v1597
        %v1649 = vmul.f32 %v639, %v1599
        %v1650 = vmul.f32 %v640, %v1597
        %v1651 = vmul.f32 %v641, %v1599
        %v1652 = vmul.f32 %v642, %v1597
        %v1653 = vmul.f32 %v643, %v1599
        %v1654 = vmul.f32 %v644, %v1597
        %v1655 = vmul.f32 %v645, %v1599
        %v1656 = vmul.f32 %v646, %v1597
        %v1657 = vmul.f32 %v647, %v1599
        %v1658 = vmul.f32 %v648, %v1597
        %v1659 = vmul.f32 %v649, %v1599
        %v1660 = vmul.f32 %v650, %v1597
        %v1661 = vmul.f32 %v651, %v1599
        %v1662 = vmul.f32 %v652, %v1597
        %v1663 = vmul.f32 %v653, %v1599
        %v1664 = vadd.f32 %v1632, %v1633
        %1665 = vadd.xlane.f32.xlu0 %v1664
        %v1666 = vpop.xlane.xlu0 %1665
        %v1667 = vadd.f32 %v1634, %v1635
        %1668 = vadd.xlane.f32.xlu0 %v1667
        %v1669 = vpop.xlane.xlu0 %1668
        %v1670 = vadd.f32 %v1636, %v1637
        %1671 = vadd.xlane.f32.xlu0 %v1670
        %v1672 = vpop.xlane.xlu0 %1671
        %v1673 = vadd.f32 %v1638, %v1639
        %1674 = vadd.xlane.f32.xlu0 %v1673
        %v1675 = vpop.xlane.xlu0 %1674
        %v1676 = vadd.f32 %v1640, %v1641
        %1677 = vadd.xlane.f32.xlu0 %v1676
        %v1678 = vpop.xlane.xlu0 %1677
        %v1679 = vadd.f32 %v1642, %v1643
        %1680 = vadd.xlane.f32.xlu0 %v1679
        %v1681 = vpop.xlane.xlu0 %1680
        %v1682 = vadd.f32 %v1644, %v1645
        %1683 = vadd.xlane.f32.xlu0 %v1682
        %v1684 = vpop.xlane.xlu0 %1683
        %v1685 = vadd.f32 %v1646, %v1647
        %1686 = vadd.xlane.f32.xlu0 %v1685
        %v1687 = vpop.xlane.xlu0 %1686
        %v1688 = vadd.f32 %v1648, %v1649
        %1689 = vadd.xlane.f32.xlu0 %v1688
        %v1690 = vpop.xlane.xlu0 %1689
        %v1691 = vadd.f32 %v1650, %v1651
        %1692 = vadd.xlane.f32.xlu0 %v1691
        %v1693 = vpop.xlane.xlu0 %1692
        %v1694 = vadd.f32 %v1652, %v1653
        %1695 = vadd.xlane.f32.xlu0 %v1694
        %v1696 = vpop.xlane.xlu0 %1695
        %v1697 = vadd.f32 %v1654, %v1655
        %1698 = vadd.xlane.f32.xlu0 %v1697
        %v1699 = vpop.xlane.xlu0 %1698
        %v1700 = vadd.f32 %v1656, %v1657
        %1701 = vadd.xlane.f32.xlu0 %v1700
        %v1702 = vpop.xlane.xlu0 %1701
        %v1703 = vadd.f32 %v1658, %v1659
        %1704 = vadd.xlane.f32.xlu0 %v1703
        %v1705 = vpop.xlane.xlu0 %1704
        %v1706 = vadd.f32 %v1660, %v1661
        %1707 = vadd.xlane.f32.xlu0 %v1706
        %v1708 = vpop.xlane.xlu0 %1707
        %v1709 = vadd.f32 %v1662, %v1663
        %1710 = vadd.xlane.f32.xlu0 %v1709
        %v1711 = vpop.xlane.xlu0 %1710
        %v1712 = vadd.f32 %v1616, %v1666
        %v1713 = vadd.f32 %v1617, %v1669
        %v1714 = vadd.f32 %v1618, %v1672
        %v1715 = vadd.f32 %v1619, %v1675
        %v1716 = vadd.f32 %v1620, %v1678
        %v1717 = vadd.f32 %v1621, %v1681
        %v1718 = vadd.f32 %v1622, %v1684
        %v1719 = vadd.f32 %v1623, %v1687
        %v1720 = vadd.f32 %v1624, %v1690
        %v1721 = vadd.f32 %v1625, %v1693
        %v1722 = vadd.f32 %v1626, %v1696
        %v1723 = vadd.f32 %v1627, %v1699
        %v1724 = vadd.f32 %v1628, %v1702
        %v1725 = vadd.f32 %v1629, %v1705
        %v1726 = vadd.f32 %v1630, %v1708
        %v1727 = vadd.f32 %v1631, %v1711
        %vm1728 = vcmask 7168
        %1729 = vst.msk [vmem:[#allocation3] sm:$0xff] %vm1728, %v1712
        %1730 = vst.msk [vmem:[#allocation3 + $0x8] sm:$0xff] %vm1728, %v1713
        %1731 = vst.msk [vmem:[#allocation3 + $0x10] sm:$0xff] %vm1728, %v1714
        %1732 = vst.msk [vmem:[#allocation3 + $0x18] sm:$0xff] %vm1728, %v1715
        %1733 = vst.msk [vmem:[#allocation3 + $0x20] sm:$0xff] %vm1728, %v1716
        %1734 = vst.msk [vmem:[#allocation3 + $0x28] sm:$0xff] %vm1728, %v1717
        %1735 = vst.msk [vmem:[#allocation3 + $0x30] sm:$0xff] %vm1728, %v1718
        %1736 = vst.msk [vmem:[#allocation3 + $0x38] sm:$0xff] %vm1728, %v1719
        %1737 = vst.msk [vmem:[#allocation3 + $0x40] sm:$0xff] %vm1728, %v1720
        %1738 = vst.msk [vmem:[#allocation3 + $0x48] sm:$0xff] %vm1728, %v1721
        %1739 = vst.msk [vmem:[#allocation3 + $0x50] sm:$0xff] %vm1728, %v1722
        %1740 = vst.msk [vmem:[#allocation3 + $0x58] sm:$0xff] %vm1728, %v1723
        %1741 = vst.msk [vmem:[#allocation3 + $0x60] sm:$0xff] %vm1728, %v1724
        %1742 = vst.msk [vmem:[#allocation3 + $0x68] sm:$0xff] %vm1728, %v1725
        %1743 = vst.msk [vmem:[#allocation3 + $0x70] sm:$0xff] %vm1728, %v1726
        %1744 = vst.msk [vmem:[#allocation3 + $0x78] sm:$0xff] %vm1728, %v1727
        %v1745 = vmul.f32 %v1174, %v1597
        %v1746 = vmul.f32 %v1175, %v1599
        %v1747 = vmul.f32 %v1176, %v1597
        %v1748 = vmul.f32 %v1177, %v1599
        %v1749 = vmul.f32 %v1178, %v1597
        %v1750 = vmul.f32 %v1179, %v1599
        %v1751 = vmul.f32 %v1180, %v1597
        %v1752 = vmul.f32 %v1181, %v1599
        %v1753 = vmul.f32 %v1182, %v1597
        %v1754 = vmul.f32 %v1183, %v1599
        %v1755 = vmul.f32 %v1184, %v1597
        %v1756 = vmul.f32 %v1185, %v1599
        %v1757 = vmul.f32 %v1186, %v1597
        %v1758 = vmul.f32 %v1187, %v1599
        %v1759 = vmul.f32 %v1188, %v1597
        %v1760 = vmul.f32 %v1189, %v1599
        %v1761 = vmul.f32 %v1190, %v1597
        %v1762 = vmul.f32 %v1191, %v1599
        %v1763 = vmul.f32 %v1192, %v1597
        %v1764 = vmul.f32 %v1193, %v1599
        %v1765 = vmul.f32 %v1194, %v1597
        %v1766 = vmul.f32 %v1195, %v1599
        %v1767 = vmul.f32 %v1196, %v1597
        %v1768 = vmul.f32 %v1197, %v1599
        %v1769 = vmul.f32 %v1198, %v1597
        %v1770 = vmul.f32 %v1199, %v1599
        %v1771 = vmul.f32 %v1200, %v1597
        %v1772 = vmul.f32 %v1201, %v1599
        %v1773 = vmul.f32 %v1202, %v1597
        %v1774 = vmul.f32 %v1203, %v1599
        %v1775 = vmul.f32 %v1204, %v1597
        %v1776 = vmul.f32 %v1205, %v1599
        %v1777 = vld [vmem:[#allocation4] sm:$0xff]
        %v1778 = vld [vmem:[#allocation4 + $0x8] sm:$0xff]
        %v1779 = vld [vmem:[#allocation4 + $0x10] sm:$0xff]
        %v1780 = vld [vmem:[#allocation4 + $0x18] sm:$0xff]
        %v1781 = vld [vmem:[#allocation4 + $0x20] sm:$0xff]
        %v1782 = vld [vmem:[#allocation4 + $0x28] sm:$0xff]
        %v1783 = vld [vmem:[#allocation4 + $0x30] sm:$0xff]
        %v1784 = vld [vmem:[#allocation4 + $0x38] sm:$0xff]
        %v1785 = vld [vmem:[#allocation4 + $0x40] sm:$0xff]
        %v1786 = vld [vmem:[#allocation4 + $0x48] sm:$0xff]
        %v1787 = vld [vmem:[#allocation4 + $0x50] sm:$0xff]
        %v1788 = vld [vmem:[#allocation4 + $0x58] sm:$0xff]
        %v1789 = vld [vmem:[#allocation4 + $0x60] sm:$0xff]
        %v1790 = vld [vmem:[#allocation4 + $0x68] sm:$0xff]
        %v1791 = vld [vmem:[#allocation4 + $0x70] sm:$0xff]
        %v1792 = vld [vmem:[#allocation4 + $0x78] sm:$0xff]
        %1794 = vset.pattern.permute.xlu0 0
        %1795 = vperm.xlu0 %1794, %v1409
        %v1796 = vpop.permute.xlu0 %1795
        %1799 = vset.pattern.permute.xlu0 0
        %1800 = vperm.xlu0 %1799, %v1411
        %v1801 = vpop.permute.xlu0 %1800
        %1804 = vset.pattern.permute.xlu0 0
        %1805 = vperm.xlu0 %1804, %v1413
        %v1806 = vpop.permute.xlu0 %1805
        %1809 = vset.pattern.permute.xlu0 0
        %1810 = vperm.xlu0 %1809, %v1415
        %v1811 = vpop.permute.xlu0 %1810
        %1814 = vset.pattern.permute.xlu0 0
        %1815 = vperm.xlu0 %1814, %v1417
        %v1816 = vpop.permute.xlu0 %1815
        %1819 = vset.pattern.permute.xlu0 0
        %1820 = vperm.xlu0 %1819, %v1419
        %v1821 = vpop.permute.xlu0 %1820
        %1824 = vset.pattern.permute.xlu0 0
        %1825 = vperm.xlu0 %1824, %v1421
        %v1826 = vpop.permute.xlu0 %1825
        %1829 = vset.pattern.permute.xlu0 0
        %1830 = vperm.xlu0 %1829, %v1423
        %v1831 = vpop.permute.xlu0 %1830
        %1834 = vset.pattern.permute.xlu0 0
        %1835 = vperm.xlu0 %1834, %v1425
        %v1836 = vpop.permute.xlu0 %1835
        %1839 = vset.pattern.permute.xlu0 0
        %1840 = vperm.xlu0 %1839, %v1427
        %v1841 = vpop.permute.xlu0 %1840
        %1844 = vset.pattern.permute.xlu0 0
        %1845 = vperm.xlu0 %1844, %v1429
        %v1846 = vpop.permute.xlu0 %1845
        %1849 = vset.pattern.permute.xlu0 0
        %1850 = vperm.xlu0 %1849, %v1431
        %v1851 = vpop.permute.xlu0 %1850
        %1854 = vset.pattern.permute.xlu0 0
        %1855 = vperm.xlu0 %1854, %v1433
        %v1856 = vpop.permute.xlu0 %1855
        %1859 = vset.pattern.permute.xlu0 0
        %1860 = vperm.xlu0 %1859, %v1435
        %v1861 = vpop.permute.xlu0 %1860
        %1864 = vset.pattern.permute.xlu0 0
        %1865 = vperm.xlu0 %1864, %v1437
        %v1866 = vpop.permute.xlu0 %1865
        %1869 = vset.pattern.permute.xlu0 0
        %1870 = vperm.xlu0 %1869, %v1439
        %v1871 = vpop.permute.xlu0 %1870
        %v1873 = vmul.f32 %v1777, %v1796
        %v1874 = vmul.f32 %v1778, %v1801
        %v1875 = vmul.f32 %v1779, %v1806
        %v1876 = vmul.f32 %v1780, %v1811
        %v1877 = vmul.f32 %v1781, %v1816
        %v1878 = vmul.f32 %v1782, %v1821
        %v1879 = vmul.f32 %v1783, %v1826
        %v1880 = vmul.f32 %v1784, %v1831
        %v1881 = vmul.f32 %v1785, %v1836
        %v1882 = vmul.f32 %v1786, %v1841
        %v1883 = vmul.f32 %v1787, %v1846
        %v1884 = vmul.f32 %v1788, %v1851
        %v1885 = vmul.f32 %v1789, %v1856
        %v1886 = vmul.f32 %v1790, %v1861
        %v1887 = vmul.f32 %v1791, %v1866
        %v1888 = vmul.f32 %v1792, %v1871
        %1889 = vmatpush.xpose.msra.mxu0 %v1775
        %1890 = vmatpush.xpose.msra.mxu0 %v1773
        %1891 = vmatpush.xpose.msra.mxu0 %v1771
        %1892 = vmatpush.xpose.msra.mxu0 %v1769
        %1893 = vmatpush.xpose.msra.mxu0 %v1767
        %1894 = vmatpush.xpose.msra.mxu0 %v1765
        %1895 = vmatpush.xpose.msra.mxu0 %v1763
        %1896 = vmatpush.xpose.msra.mxu0 %v1761
        %1897 = vmatpush.xpose.msra.mxu0 %v1759
        %1898 = vmatpush.xpose.msra.mxu0 %v1757
        %1899 = vmatpush.xpose.msra.mxu0 %v1755
        %1900 = vmatpush.xpose.msra.mxu0 %v1753
        %1901 = vmatpush.xpose.msra.mxu0 %v1751
        %1902 = vmatpush.xpose.msra.mxu0 %v1749
        %1903 = vmatpush.xpose.msra.mxu0 %v1747
        %1904 = vmatpush.xpose.msra.mxu0 %v1745
        %1905 = vmatmul.f32.gmra.mxu0 %v622
        %v1906 = vpop.f32.mrf.mxu0
        %v1907 = vadd.f32 0.0, %v1906
        %1908 = vmatmul.f32.gmra.mxu0 %v624
        %v1909 = vpop.f32.mrf.mxu0
        %v1910 = vadd.f32 0.0, %v1909
        %1911 = vmatmul.f32.gmra.mxu0 %v626
        %v1912 = vpop.f32.mrf.mxu0
        %v1913 = vadd.f32 0.0, %v1912
        %1914 = vmatmul.f32.gmra.mxu0 %v628
        %v1915 = vpop.f32.mrf.mxu0
        %v1916 = vadd.f32 0.0, %v1915
        %1917 = vmatmul.f32.gmra.mxu0 %v630
        %v1918 = vpop.f32.mrf.mxu0
        %v1919 = vadd.f32 0.0, %v1918
        %1920 = vmatmul.f32.gmra.mxu0 %v632
        %v1921 = vpop.f32.mrf.mxu0
        %v1922 = vadd.f32 0.0, %v1921
        %1923 = vmatmul.f32.gmra.mxu0 %v634
        %v1924 = vpop.f32.mrf.mxu0
        %v1925 = vadd.f32 0.0, %v1924
        %1926 = vmatmul.f32.gmra.mxu0 %v636
        %v1927 = vpop.f32.mrf.mxu0
        %v1928 = vadd.f32 0.0, %v1927
        %1929 = vmatmul.f32.gmra.mxu0 %v638
        %v1930 = vpop.f32.mrf.mxu0
        %v1931 = vadd.f32 0.0, %v1930
        %1932 = vmatmul.f32.gmra.mxu0 %v640
        %v1933 = vpop.f32.mrf.mxu0
        %v1934 = vadd.f32 0.0, %v1933
        %1935 = vmatmul.f32.gmra.mxu0 %v642
        %v1936 = vpop.f32.mrf.mxu0
        %v1937 = vadd.f32 0.0, %v1936
        %1938 = vmatmul.f32.gmra.mxu0 %v644
        %v1939 = vpop.f32.mrf.mxu0
        %v1940 = vadd.f32 0.0, %v1939
        %1941 = vmatmul.f32.gmra.mxu0 %v646
        %v1942 = vpop.f32.mrf.mxu0
        %v1943 = vadd.f32 0.0, %v1942
        %1944 = vmatmul.f32.gmra.mxu0 %v648
        %v1945 = vpop.f32.mrf.mxu0
        %v1946 = vadd.f32 0.0, %v1945
        %1947 = vmatmul.f32.gmra.mxu0 %v650
        %v1948 = vpop.f32.mrf.mxu0
        %v1949 = vadd.f32 0.0, %v1948
        %1950 = vmatmul.f32.gmra.mxu0 %v652
        %v1951 = vpop.f32.mrf.mxu0
        %v1952 = vadd.f32 0.0, %v1951
        %1953 = vdwg.mxu0
        %1954 = vmatpush.xpose.msra.mxu0 %v1776
        %1955 = vmatpush.xpose.msra.mxu0 %v1774
        %1956 = vmatpush.xpose.msra.mxu0 %v1772
        %1957 = vmatpush.xpose.msra.mxu0 %v1770
        %1958 = vmatpush.xpose.msra.mxu0 %v1768
        %1959 = vmatpush.xpose.msra.mxu0 %v1766
        %1960 = vmatpush.xpose.msra.mxu0 %v1764
        %1961 = vmatpush.xpose.msra.mxu0 %v1762
        %1962 = vmatpush.xpose.msra.mxu0 %v1760
        %1963 = vmatpush.xpose.msra.mxu0 %v1758
        %1964 = vmatpush.xpose.msra.mxu0 %v1756
        %1965 = vmatpush.xpose.msra.mxu0 %v1754
        %1966 = vmatpush.xpose.msra.mxu0 %v1752
        %1967 = vmatpush.xpose.msra.mxu0 %v1750
        %1968 = vmatpush.xpose.msra.mxu0 %v1748
        %1969 = vmatpush.xpose.msra.mxu0 %v1746
        %1970 = vmatmul.f32.gmra.mxu0 %v623
        %v1971 = vpop.f32.mrf.mxu0
        %v1972 = vadd.f32 %v1907, %v1971
        %1973 = vmatmul.f32.gmra.mxu0 %v625
        %v1974 = vpop.f32.mrf.mxu0
        %v1975 = vadd.f32 %v1910, %v1974
        %1976 = vmatmul.f32.gmra.mxu0 %v627
        %v1977 = vpop.f32.mrf.mxu0
        %v1978 = vadd.f32 %v1913, %v1977
        %1979 = vmatmul.f32.gmra.mxu0 %v629
        %v1980 = vpop.f32.mrf.mxu0
        %v1981 = vadd.f32 %v1916, %v1980
        %1982 = vmatmul.f32.gmra.mxu0 %v631
        %v1983 = vpop.f32.mrf.mxu0
        %v1984 = vadd.f32 %v1919, %v1983
        %1985 = vmatmul.f32.gmra.mxu0 %v633
        %v1986 = vpop.f32.mrf.mxu0
        %v1987 = vadd.f32 %v1922, %v1986
        %1988 = vmatmul.f32.gmra.mxu0 %v635
        %v1989 = vpop.f32.mrf.mxu0
        %v1990 = vadd.f32 %v1925, %v1989
        %1991 = vmatmul.f32.gmra.mxu0 %v637
        %v1992 = vpop.f32.mrf.mxu0
        %v1993 = vadd.f32 %v1928, %v1992
        %1994 = vmatmul.f32.gmra.mxu0 %v639
        %v1995 = vpop.f32.mrf.mxu0
        %v1996 = vadd.f32 %v1931, %v1995
        %1997 = vmatmul.f32.gmra.mxu0 %v641
        %v1998 = vpop.f32.mrf.mxu0
        %v1999 = vadd.f32 %v1934, %v1998
        %2000 = vmatmul.f32.gmra.mxu0 %v643
        %v2001 = vpop.f32.mrf.mxu0
        %v2002 = vadd.f32 %v1937, %v2001
        %2003 = vmatmul.f32.gmra.mxu0 %v645
        %v2004 = vpop.f32.mrf.mxu0
        %v2005 = vadd.f32 %v1940, %v2004
        %2006 = vmatmul.f32.gmra.mxu0 %v647
        %v2007 = vpop.f32.mrf.mxu0
        %v2008 = vadd.f32 %v1943, %v2007
        %2009 = vmatmul.f32.gmra.mxu0 %v649
        %v2010 = vpop.f32.mrf.mxu0
        %v2011 = vadd.f32 %v1946, %v2010
        %2012 = vmatmul.f32.gmra.mxu0 %v651
        %v2013 = vpop.f32.mrf.mxu0
        %v2014 = vadd.f32 %v1949, %v2013
        %2015 = vmatmul.f32.gmra.mxu0 %v653
        %v2016 = vpop.f32.mrf.mxu0
        %v2017 = vadd.f32 %v1952, %v2016
        %2018 = vdwg.mxu0
        %v2019 = vadd.f32 %v1873, %v1972
        %v2020 = vadd.f32 %v1874, %v1975
        %v2021 = vadd.f32 %v1875, %v1978
        %v2022 = vadd.f32 %v1876, %v1981
        %v2023 = vadd.f32 %v1877, %v1984
        %v2024 = vadd.f32 %v1878, %v1987
        %v2025 = vadd.f32 %v1879, %v1990
        %v2026 = vadd.f32 %v1880, %v1993
        %v2027 = vadd.f32 %v1881, %v1996
        %v2028 = vadd.f32 %v1882, %v1999
        %v2029 = vadd.f32 %v1883, %v2002
        %v2030 = vadd.f32 %v1884, %v2005
        %v2031 = vadd.f32 %v1885, %v2008
        %v2032 = vadd.f32 %v1886, %v2011
        %v2033 = vadd.f32 %v1887, %v2014
        %v2034 = vadd.f32 %v1888, %v2017
        %2035 = vst [vmem:[#allocation4] sm:$0xff] %v2019
        %2036 = vst [vmem:[#allocation4 + $0x8] sm:$0xff] %v2020
        %2037 = vst [vmem:[#allocation4 + $0x10] sm:$0xff] %v2021
        %2038 = vst [vmem:[#allocation4 + $0x18] sm:$0xff] %v2022
        %2039 = vst [vmem:[#allocation4 + $0x20] sm:$0xff] %v2023
        %2040 = vst [vmem:[#allocation4 + $0x28] sm:$0xff] %v2024
        %2041 = vst [vmem:[#allocation4 + $0x30] sm:$0xff] %v2025
        %2042 = vst [vmem:[#allocation4 + $0x38] sm:$0xff] %v2026
        %2043 = vst [vmem:[#allocation4 + $0x40] sm:$0xff] %v2027
        %2044 = vst [vmem:[#allocation4 + $0x48] sm:$0xff] %v2028
        %2045 = vst [vmem:[#allocation4 + $0x50] sm:$0xff] %v2029
        %2046 = vst [vmem:[#allocation4 + $0x58] sm:$0xff] %v2030
        %2047 = vst [vmem:[#allocation4 + $0x60] sm:$0xff] %v2031
        %2048 = vst [vmem:[#allocation4 + $0x68] sm:$0xff] %v2032
        %2049 = vst [vmem:[#allocation4 + $0x70] sm:$0xff] %v2033
        %2050 = vst [vmem:[#allocation4 + $0x78] sm:$0xff] %v2034
        %2051 = vst.msk [vmem:[#allocation2] sm:$0xff] %vm1728, %v1376
        %2052 = vst.msk [vmem:[#allocation2 + $0x8] sm:$0xff] %vm1728, %v1377
        %2053 = vst.msk [vmem:[#allocation2 + $0x10] sm:$0xff] %vm1728, %v1378
        %2054 = vst.msk [vmem:[#allocation2 + $0x18] sm:$0xff] %vm1728, %v1379
        %2055 = vst.msk [vmem:[#allocation2 + $0x20] sm:$0xff] %vm1728, %v1380
        %2056 = vst.msk [vmem:[#allocation2 + $0x28] sm:$0xff] %vm1728, %v1381
        %2057 = vst.msk [vmem:[#allocation2 + $0x30] sm:$0xff] %vm1728, %v1382
        %2058 = vst.msk [vmem:[#allocation2 + $0x38] sm:$0xff] %vm1728, %v1383
        %2059 = vst.msk [vmem:[#allocation2 + $0x40] sm:$0xff] %vm1728, %v1384
        %2060 = vst.msk [vmem:[#allocation2 + $0x48] sm:$0xff] %vm1728, %v1385
        %2061 = vst.msk [vmem:[#allocation2 + $0x50] sm:$0xff] %vm1728, %v1386
        %2062 = vst.msk [vmem:[#allocation2 + $0x58] sm:$0xff] %vm1728, %v1387
        %2063 = vst.msk [vmem:[#allocation2 + $0x60] sm:$0xff] %vm1728, %v1388
        %2064 = vst.msk [vmem:[#allocation2 + $0x68] sm:$0xff] %vm1728, %v1389
        %2065 = vst.msk [vmem:[#allocation2 + $0x70] sm:$0xff] %vm1728, %v1390
        %2066 = vst.msk [vmem:[#allocation2 + $0x78] sm:$0xff] %vm1728, %v1391
        %p2067 = scmp.eq.s32.totalorder %s26, 2
        // Predicated region
        $region73: #{tpu_custom_call.1} parent=43 // pred_check
          %p2068 = pneg %p2067
        $region74: #{tpu_custom_call.1} parent=43 // pred_check_branch
          %2070 = sbr.rel (%p2068) target = $region76
        $region75: #{tpu_custom_call.1} parent=43 // pred_region
          %v2071 = vld [vmem:[#allocation3] sm:$0xff]
          %v2072 = vld [vmem:[#allocation3 + $0x8] sm:$0xff]
          %v2073 = vld [vmem:[#allocation3 + $0x10] sm:$0xff]
          %v2074 = vld [vmem:[#allocation3 + $0x18] sm:$0xff]
          %v2075 = vld [vmem:[#allocation3 + $0x20] sm:$0xff]
          %v2076 = vld [vmem:[#allocation3 + $0x28] sm:$0xff]
          %v2077 = vld [vmem:[#allocation3 + $0x30] sm:$0xff]
          %v2078 = vld [vmem:[#allocation3 + $0x38] sm:$0xff]
          %v2079 = vld [vmem:[#allocation3 + $0x40] sm:$0xff]
          %v2080 = vld [vmem:[#allocation3 + $0x48] sm:$0xff]
          %v2081 = vld [vmem:[#allocation3 + $0x50] sm:$0xff]
          %v2082 = vld [vmem:[#allocation3 + $0x58] sm:$0xff]
          %v2083 = vld [vmem:[#allocation3 + $0x60] sm:$0xff]
          %v2084 = vld [vmem:[#allocation3 + $0x68] sm:$0xff]
          %v2085 = vld [vmem:[#allocation3 + $0x70] sm:$0xff]
          %v2086 = vld [vmem:[#allocation3 + $0x78] sm:$0xff]
          %v2087 = vmax.f32 %v2071, 1e-30
          %v2088 = vmax.f32 %v2072, 1e-30
          %v2089 = vmax.f32 %v2073, 1e-30
          %v2090 = vmax.f32 %v2074, 1e-30
          %v2091 = vmax.f32 %v2075, 1e-30
          %v2092 = vmax.f32 %v2076, 1e-30
          %v2093 = vmax.f32 %v2077, 1e-30
          %v2094 = vmax.f32 %v2078, 1e-30
          %v2095 = vmax.f32 %v2079, 1e-30
          %v2096 = vmax.f32 %v2080, 1e-30
          %v2097 = vmax.f32 %v2081, 1e-30
          %v2098 = vmax.f32 %v2082, 1e-30
          %v2099 = vmax.f32 %v2083, 1e-30
          %v2100 = vmax.f32 %v2084, 1e-30
          %v2101 = vmax.f32 %v2085, 1e-30
          %v2102 = vmax.f32 %v2086, 1e-30
          %v2103 = vld [vmem:[#allocation4] sm:$0xff]
          %v2104 = vld [vmem:[#allocation4 + $0x8] sm:$0xff]
          %v2105 = vld [vmem:[#allocation4 + $0x10] sm:$0xff]
          %v2106 = vld [vmem:[#allocation4 + $0x18] sm:$0xff]
          %v2107 = vld [vmem:[#allocation4 + $0x20] sm:$0xff]
          %v2108 = vld [vmem:[#allocation4 + $0x28] sm:$0xff]
          %v2109 = vld [vmem:[#allocation4 + $0x30] sm:$0xff]
          %v2110 = vld [vmem:[#allocation4 + $0x38] sm:$0xff]
          %v2111 = vld [vmem:[#allocation4 + $0x40] sm:$0xff]
          %v2112 = vld [vmem:[#allocation4 + $0x48] sm:$0xff]
          %v2113 = vld [vmem:[#allocation4 + $0x50] sm:$0xff]
          %v2114 = vld [vmem:[#allocation4 + $0x58] sm:$0xff]
          %v2115 = vld [vmem:[#allocation4 + $0x60] sm:$0xff]
          %v2116 = vld [vmem:[#allocation4 + $0x68] sm:$0xff]
          %v2117 = vld [vmem:[#allocation4 + $0x70] sm:$0xff]
          %v2118 = vld [vmem:[#allocation4 + $0x78] sm:$0xff]
          %v2119 = vrcp.pop %v2087
          %v2120 = vmul.f32 %v2087, %v2119
          %v2121 = vsub.f32 1.0, %v2120
          %v2122 = vmul.f32 %v2119, %v2121
          %v2123 = vadd.f32 %v2119, %v2122
          %vm2124 = vweird.f32 %v2087
          %vm2125 = vweird.f32 %v2119
          %vm2126 = vmor %vm2124, %vm2125
          %v2127 = vsel %vm2126, %v2119, %v2123
          %v2128 = vand.u32 2147483647, %v2087
          %vm2129 = vcmp.eq.f32.partialorder %v2128, 8.507059e+37
          %v2130 = vand.u32 %v2087, 2147483648
          %v2131 = vor.u32 1.1754944e-38, %v2130
          %v2132 = vsel %vm2129, %v2131, %v2127
          %v2133 = vrcp.pop %v2088
          %v2134 = vmul.f32 %v2088, %v2133
          %v2135 = vsub.f32 1.0, %v2134
          %v2136 = vmul.f32 %v2133, %v2135
          %v2137 = vadd.f32 %v2133, %v2136
          %vm2138 = vweird.f32 %v2088
          %vm2139 = vweird.f32 %v2133
          %vm2140 = vmor %vm2138, %vm2139
          %v2141 = vsel %vm2140, %v2133, %v2137
          %v2142 = vand.u32 2147483647, %v2088
          %vm2143 = vcmp.eq.f32.partialorder %v2142, 8.507059e+37
          %v2144 = vand.u32 %v2088, 2147483648
          %v2145 = vor.u32 1.1754944e-38, %v2144
          %v2146 = vsel %vm2143, %v2145, %v2141
          %v2147 = vrcp.pop %v2089
          %v2148 = vmul.f32 %v2089, %v2147
          %v2149 = vsub.f32 1.0, %v2148
          %v2150 = vmul.f32 %v2147, %v2149
          %v2151 = vadd.f32 %v2147, %v2150
          %vm2152 = vweird.f32 %v2089
          %vm2153 = vweird.f32 %v2147
          %vm2154 = vmor %vm2152, %vm2153
          %v2155 = vsel %vm2154, %v2147, %v2151
          %v2156 = vand.u32 2147483647, %v2089
          %vm2157 = vcmp.eq.f32.partialorder %v2156, 8.507059e+37
          %v2158 = vand.u32 %v2089, 2147483648
          %v2159 = vor.u32 1.1754944e-38, %v2158
          %v2160 = vsel %vm2157, %v2159, %v2155
          %v2161 = vrcp.pop %v2090
          %v2162 = vmul.f32 %v2090, %v2161
          %v2163 = vsub.f32 1.0, %v2162
          %v2164 = vmul.f32 %v2161, %v2163
          %v2165 = vadd.f32 %v2161, %v2164
          %vm2166 = vweird.f32 %v2090
          %vm2167 = vweird.f32 %v2161
          %vm2168 = vmor %vm2166, %vm2167
          %v2169 = vsel %vm2168, %v2161, %v2165
          %v2170 = vand.u32 2147483647, %v2090
          %vm2171 = vcmp.eq.f32.partialorder %v2170, 8.507059e+37
          %v2172 = vand.u32 %v2090, 2147483648
          %v2173 = vor.u32 1.1754944e-38, %v2172
          %v2174 = vsel %vm2171, %v2173, %v2169
          %v2175 = vrcp.pop %v2091
          %v2176 = vmul.f32 %v2091, %v2175
          %v2177 = vsub.f32 1.0, %v2176
          %v2178 = vmul.f32 %v2175, %v2177
          %v2179 = vadd.f32 %v2175, %v2178
          %vm2180 = vweird.f32 %v2091
          %vm2181 = vweird.f32 %v2175
          %vm2182 = vmor %vm2180, %vm2181
          %v2183 = vsel %vm2182, %v2175, %v2179
          %v2184 = vand.u32 2147483647, %v2091
          %vm2185 = vcmp.eq.f32.partialorder %v2184, 8.507059e+37
          %v2186 = vand.u32 %v2091, 2147483648
          %v2187 = vor.u32 1.1754944e-38, %v2186
          %v2188 = vsel %vm2185, %v2187, %v2183
          %v2189 = vrcp.pop %v2092
          %v2190 = vmul.f32 %v2092, %v2189
          %v2191 = vsub.f32 1.0, %v2190
          %v2192 = vmul.f32 %v2189, %v2191
          %v2193 = vadd.f32 %v2189, %v2192
          %vm2194 = vweird.f32 %v2092
          %vm2195 = vweird.f32 %v2189
          %vm2196 = vmor %vm2194, %vm2195
          %v2197 = vsel %vm2196, %v2189, %v2193
          %v2198 = vand.u32 2147483647, %v2092
          %vm2199 = vcmp.eq.f32.partialorder %v2198, 8.507059e+37
          %v2200 = vand.u32 %v2092, 2147483648
          %v2201 = vor.u32 1.1754944e-38, %v2200
          %v2202 = vsel %vm2199, %v2201, %v2197
          %v2203 = vrcp.pop %v2093
          %v2204 = vmul.f32 %v2093, %v2203
          %v2205 = vsub.f32 1.0, %v2204
          %v2206 = vmul.f32 %v2203, %v2205
          %v2207 = vadd.f32 %v2203, %v2206
          %vm2208 = vweird.f32 %v2093
          %vm2209 = vweird.f32 %v2203
          %vm2210 = vmor %vm2208, %vm2209
          %v2211 = vsel %vm2210, %v2203, %v2207
          %v2212 = vand.u32 2147483647, %v2093
          %vm2213 = vcmp.eq.f32.partialorder %v2212, 8.507059e+37
          %v2214 = vand.u32 %v2093, 2147483648
          %v2215 = vor.u32 1.1754944e-38, %v2214
          %v2216 = vsel %vm2213, %v2215, %v2211
          %v2217 = vrcp.pop %v2094
          %v2218 = vmul.f32 %v2094, %v2217
          %v2219 = vsub.f32 1.0, %v2218
          %v2220 = vmul.f32 %v2217, %v2219
          %v2221 = vadd.f32 %v2217, %v2220
          %vm2222 = vweird.f32 %v2094
          %vm2223 = vweird.f32 %v2217
          %vm2224 = vmor %vm2222, %vm2223
          %v2225 = vsel %vm2224, %v2217, %v2221
          %v2226 = vand.u32 2147483647, %v2094
          %vm2227 = vcmp.eq.f32.partialorder %v2226, 8.507059e+37
          %v2228 = vand.u32 %v2094, 2147483648
          %v2229 = vor.u32 1.1754944e-38, %v2228
          %v2230 = vsel %vm2227, %v2229, %v2225
          %v2231 = vrcp.pop %v2095
          %v2232 = vmul.f32 %v2095, %v2231
          %v2233 = vsub.f32 1.0, %v2232
          %v2234 = vmul.f32 %v2231, %v2233
          %v2235 = vadd.f32 %v2231, %v2234
          %vm2236 = vweird.f32 %v2095
          %vm2237 = vweird.f32 %v2231
          %vm2238 = vmor %vm2236, %vm2237
          %v2239 = vsel %vm2238, %v2231, %v2235
          %v2240 = vand.u32 2147483647, %v2095
          %vm2241 = vcmp.eq.f32.partialorder %v2240, 8.507059e+37
          %v2242 = vand.u32 %v2095, 2147483648
          %v2243 = vor.u32 1.1754944e-38, %v2242
          %v2244 = vsel %vm2241, %v2243, %v2239
          %v2245 = vrcp.pop %v2096
          %v2246 = vmul.f32 %v2096, %v2245
          %v2247 = vsub.f32 1.0, %v2246
          %v2248 = vmul.f32 %v2245, %v2247
          %v2249 = vadd.f32 %v2245, %v2248
          %vm2250 = vweird.f32 %v2096
          %vm2251 = vweird.f32 %v2245
          %vm2252 = vmor %vm2250, %vm2251
          %v2253 = vsel %vm2252, %v2245, %v2249
          %v2254 = vand.u32 2147483647, %v2096
          %vm2255 = vcmp.eq.f32.partialorder %v2254, 8.507059e+37
          %v2256 = vand.u32 %v2096, 2147483648
          %v2257 = vor.u32 1.1754944e-38, %v2256
          %v2258 = vsel %vm2255, %v2257, %v2253
          %v2259 = vrcp.pop %v2097
          %v2260 = vmul.f32 %v2097, %v2259
          %v2261 = vsub.f32 1.0, %v2260
          %v2262 = vmul.f32 %v2259, %v2261
          %v2263 = vadd.f32 %v2259, %v2262
          %vm2264 = vweird.f32 %v2097
          %vm2265 = vweird.f32 %v2259
          %vm2266 = vmor %vm2264, %vm2265
          %v2267 = vsel %vm2266, %v2259, %v2263
          %v2268 = vand.u32 2147483647, %v2097
          %vm2269 = vcmp.eq.f32.partialorder %v2268, 8.507059e+37
          %v2270 = vand.u32 %v2097, 2147483648
          %v2271 = vor.u32 1.1754944e-38, %v2270
          %v2272 = vsel %vm2269, %v2271, %v2267
          %v2273 = vrcp.pop %v2098
          %v2274 = vmul.f32 %v2098, %v2273
          %v2275 = vsub.f32 1.0, %v2274
          %v2276 = vmul.f32 %v2273, %v2275
          %v2277 = vadd.f32 %v2273, %v2276
          %vm2278 = vweird.f32 %v2098
          %vm2279 = vweird.f32 %v2273
          %vm2280 = vmor %vm2278, %vm2279
          %v2281 = vsel %vm2280, %v2273, %v2277
          %v2282 = vand.u32 2147483647, %v2098
          %vm2283 = vcmp.eq.f32.partialorder %v2282, 8.507059e+37
          %v2284 = vand.u32 %v2098, 2147483648
          %v2285 = vor.u32 1.1754944e-38, %v2284
          %v2286 = vsel %vm2283, %v2285, %v2281
          %v2287 = vrcp.pop %v2099
          %v2288 = vmul.f32 %v2099, %v2287
          %v2289 = vsub.f32 1.0, %v2288
          %v2290 = vmul.f32 %v2287, %v2289
          %v2291 = vadd.f32 %v2287, %v2290
          %vm2292 = vweird.f32 %v2099
          %vm2293 = vweird.f32 %v2287
          %vm2294 = vmor %vm2292, %vm2293
          %v2295 = vsel %vm2294, %v2287, %v2291
          %v2296 = vand.u32 2147483647, %v2099
          %vm2297 = vcmp.eq.f32.partialorder %v2296, 8.507059e+37
          %v2298 = vand.u32 %v2099, 2147483648
          %v2299 = vor.u32 1.1754944e-38, %v2298
          %v2300 = vsel %vm2297, %v2299, %v2295
          %v2301 = vrcp.pop %v2100
          %v2302 = vmul.f32 %v2100, %v2301
          %v2303 = vsub.f32 1.0, %v2302
          %v2304 = vmul.f32 %v2301, %v2303
          %v2305 = vadd.f32 %v2301, %v2304
          %vm2306 = vweird.f32 %v2100
          %vm2307 = vweird.f32 %v2301
          %vm2308 = vmor %vm2306, %vm2307
          %v2309 = vsel %vm2308, %v2301, %v2305
          %v2310 = vand.u32 2147483647, %v2100
          %vm2311 = vcmp.eq.f32.partialorder %v2310, 8.507059e+37
          %v2312 = vand.u32 %v2100, 2147483648
          %v2313 = vor.u32 1.1754944e-38, %v2312
          %v2314 = vsel %vm2311, %v2313, %v2309
          %v2315 = vrcp.pop %v2101
          %v2316 = vmul.f32 %v2101, %v2315
          %v2317 = vsub.f32 1.0, %v2316
          %v2318 = vmul.f32 %v2315, %v2317
          %v2319 = vadd.f32 %v2315, %v2318
          %vm2320 = vweird.f32 %v2101
          %vm2321 = vweird.f32 %v2315
          %vm2322 = vmor %vm2320, %vm2321
          %v2323 = vsel %vm2322, %v2315, %v2319
          %v2324 = vand.u32 2147483647, %v2101
          %vm2325 = vcmp.eq.f32.partialorder %v2324, 8.507059e+37
          %v2326 = vand.u32 %v2101, 2147483648
          %v2327 = vor.u32 1.1754944e-38, %v2326
          %v2328 = vsel %vm2325, %v2327, %v2323
          %v2329 = vrcp.pop %v2102
          %v2330 = vmul.f32 %v2102, %v2329
          %v2331 = vsub.f32 1.0, %v2330
          %v2332 = vmul.f32 %v2329, %v2331
          %v2333 = vadd.f32 %v2329, %v2332
          %vm2334 = vweird.f32 %v2102
          %vm2335 = vweird.f32 %v2329
          %vm2336 = vmor %vm2334, %vm2335
          %v2337 = vsel %vm2336, %v2329, %v2333
          %v2338 = vand.u32 2147483647, %v2102
          %vm2339 = vcmp.eq.f32.partialorder %v2338, 8.507059e+37
          %v2340 = vand.u32 %v2102, 2147483648
          %v2341 = vor.u32 1.1754944e-38, %v2340
          %v2342 = vsel %vm2339, %v2341, %v2337
          %2344 = vset.pattern.permute.xlu0 0
          %2345 = vperm.xlu0 %2344, %v2132
          %v2346 = vpop.permute.xlu0 %2345
          %2349 = vset.pattern.permute.xlu0 0
          %2350 = vperm.xlu0 %2349, %v2146
          %v2351 = vpop.permute.xlu0 %2350
          %2354 = vset.pattern.permute.xlu0 0
          %2355 = vperm.xlu0 %2354, %v2160
          %v2356 = vpop.permute.xlu0 %2355
          %2359 = vset.pattern.permute.xlu0 0
          %2360 = vperm.xlu0 %2359, %v2174
          %v2361 = vpop.permute.xlu0 %2360
          %2364 = vset.pattern.permute.xlu0 0
          %2365 = vperm.xlu0 %2364, %v2188
          %v2366 = vpop.permute.xlu0 %2365
          %2369 = vset.pattern.permute.xlu0 0
          %2370 = vperm.xlu0 %2369, %v2202
          %v2371 = vpop.permute.xlu0 %2370
          %2374 = vset.pattern.permute.xlu0 0
          %2375 = vperm.xlu0 %2374, %v2216
          %v2376 = vpop.permute.xlu0 %2375
          %2379 = vset.pattern.permute.xlu0 0
          %2380 = vperm.xlu0 %2379, %v2230
          %v2381 = vpop.permute.xlu0 %2380
          %2384 = vset.pattern.permute.xlu0 0
          %2385 = vperm.xlu0 %2384, %v2244
          %v2386 = vpop.permute.xlu0 %2385
          %2389 = vset.pattern.permute.xlu0 0
          %2390 = vperm.xlu0 %2389, %v2258
          %v2391 = vpop.permute.xlu0 %2390
          %2394 = vset.pattern.permute.xlu0 0
          %2395 = vperm.xlu0 %2394, %v2272
          %v2396 = vpop.permute.xlu0 %2395
          %2399 = vset.pattern.permute.xlu0 0
          %2400 = vperm.xlu0 %2399, %v2286
          %v2401 = vpop.permute.xlu0 %2400
          %2404 = vset.pattern.permute.xlu0 0
          %2405 = vperm.xlu0 %2404, %v2300
          %v2406 = vpop.permute.xlu0 %2405
          %2409 = vset.pattern.permute.xlu0 0
          %2410 = vperm.xlu0 %2409, %v2314
          %v2411 = vpop.permute.xlu0 %2410
          %2414 = vset.pattern.permute.xlu0 0
          %2415 = vperm.xlu0 %2414, %v2328
          %v2416 = vpop.permute.xlu0 %2415
          %2419 = vset.pattern.permute.xlu0 0
          %2420 = vperm.xlu0 %2419, %v2342
          %v2421 = vpop.permute.xlu0 %2420
          %v2423 = vmul.f32 %v2103, %v2346
          %v2424 = vmul.f32 %v2104, %v2351
          %v2425 = vmul.f32 %v2105, %v2356
          %v2426 = vmul.f32 %v2106, %v2361
          %v2427 = vmul.f32 %v2107, %v2366
          %v2428 = vmul.f32 %v2108, %v2371
          %v2429 = vmul.f32 %v2109, %v2376
          %v2430 = vmul.f32 %v2110, %v2381
          %v2431 = vmul.f32 %v2111, %v2386
          %v2432 = vmul.f32 %v2112, %v2391
          %v2433 = vmul.f32 %v2113, %v2396
          %v2434 = vmul.f32 %v2114, %v2401
          %v2435 = vmul.f32 %v2115, %v2406
          %v2436 = vmul.f32 %v2116, %v2411
          %v2437 = vmul.f32 %v2117, %v2416
          %v2438 = vmul.f32 %v2118, %v2421
          %v2439 = vld [vmem:[#allocation14] sm:$0xff]
          %v2440 = vld [vmem:[#allocation14 + $0x8] sm:$0xff]
          %v2441 = vld [vmem:[#allocation14 + $0x10] sm:$0xff]
          %v2442 = vld [vmem:[#allocation14 + $0x18] sm:$0xff]
          %v2443 = vld [vmem:[#allocation14 + $0x20] sm:$0xff]
          %v2444 = vld [vmem:[#allocation14 + $0x28] sm:$0xff]
          %v2445 = vld [vmem:[#allocation14 + $0x30] sm:$0xff]
          %v2446 = vld [vmem:[#allocation14 + $0x38] sm:$0xff]
          %v2447 = vld [vmem:[#allocation14 + $0x40] sm:$0xff]
          %v2448 = vld [vmem:[#allocation14 + $0x48] sm:$0xff]
          %v2449 = vld [vmem:[#allocation14 + $0x50] sm:$0xff]
          %v2450 = vld [vmem:[#allocation14 + $0x58] sm:$0xff]
          %v2451 = vld [vmem:[#allocation14 + $0x60] sm:$0xff]
          %v2452 = vld [vmem:[#allocation14 + $0x68] sm:$0xff]
          %v2453 = vld [vmem:[#allocation14 + $0x70] sm:$0xff]
          %v2454 = vld [vmem:[#allocation14 + $0x78] sm:$0xff]
          %2455 = vmatpush.msra.mxu0 %v2454
          %2456 = vmatpush.msra.mxu0 %v2453
          %2457 = vmatpush.msra.mxu0 %v2452
          %2458 = vmatpush.msra.mxu0 %v2451
          %2459 = vmatpush.msra.mxu0 %v2450
          %2460 = vmatpush.msra.mxu0 %v2449
          %2461 = vmatpush.msra.mxu0 %v2448
          %2462 = vmatpush.msra.mxu0 %v2447
          %2463 = vmatpush.msra.mxu0 %v2446
          %2464 = vmatpush.msra.mxu0 %v2445
          %2465 = vmatpush.msra.mxu0 %v2444
          %2466 = vmatpush.msra.mxu0 %v2443
          %2467 = vmatpush.msra.mxu0 %v2442
          %2468 = vmatpush.msra.mxu0 %v2441
          %2469 = vmatpush.msra.mxu0 %v2440
          %2470 = vmatpush.msra.mxu0 %v2439
          %2471 = vmatmul.f32.gmra.mxu0 %v2423
          %v2472 = vpop.f32.mrf.mxu0
          %v2473 = vadd.f32 0.0, %v2472
          %2474 = vmatmul.f32.gmra.mxu0 %v2424
          %v2475 = vpop.f32.mrf.mxu0
          %v2476 = vadd.f32 0.0, %v2475
          %2477 = vmatmul.f32.gmra.mxu0 %v2425
          %v2478 = vpop.f32.mrf.mxu0
          %v2479 = vadd.f32 0.0, %v2478
          %2480 = vmatmul.f32.gmra.mxu0 %v2426
          %v2481 = vpop.f32.mrf.mxu0
          %v2482 = vadd.f32 0.0, %v2481
          %2483 = vmatmul.f32.gmra.mxu0 %v2427
          %v2484 = vpop.f32.mrf.mxu0
          %v2485 = vadd.f32 0.0, %v2484
          %2486 = vmatmul.f32.gmra.mxu0 %v2428
          %v2487 = vpop.f32.mrf.mxu0
          %v2488 = vadd.f32 0.0, %v2487
          %2489 = vmatmul.f32.gmra.mxu0 %v2429
          %v2490 = vpop.f32.mrf.mxu0
          %v2491 = vadd.f32 0.0, %v2490
          %2492 = vmatmul.f32.gmra.mxu0 %v2430
          %v2493 = vpop.f32.mrf.mxu0
          %v2494 = vadd.f32 0.0, %v2493
          %2495 = vmatmul.f32.gmra.mxu0 %v2431
          %v2496 = vpop.f32.mrf.mxu0
          %v2497 = vadd.f32 0.0, %v2496
          %2498 = vmatmul.f32.gmra.mxu0 %v2432
          %v2499 = vpop.f32.mrf.mxu0
          %v2500 = vadd.f32 0.0, %v2499
          %2501 = vmatmul.f32.gmra.mxu0 %v2433
          %v2502 = vpop.f32.mrf.mxu0
          %v2503 = vadd.f32 0.0, %v2502
          %2504 = vmatmul.f32.gmra.mxu0 %v2434
          %v2505 = vpop.f32.mrf.mxu0
          %v2506 = vadd.f32 0.0, %v2505
          %2507 = vmatmul.f32.gmra.mxu0 %v2435
          %v2508 = vpop.f32.mrf.mxu0
          %v2509 = vadd.f32 0.0, %v2508
          %2510 = vmatmul.f32.gmra.mxu0 %v2436
          %v2511 = vpop.f32.mrf.mxu0
          %v2512 = vadd.f32 0.0, %v2511
          %2513 = vmatmul.f32.gmra.mxu0 %v2437
          %v2514 = vpop.f32.mrf.mxu0
          %v2515 = vadd.f32 0.0, %v2514
          %2516 = vmatmul.f32.gmra.mxu0 %v2438
          %v2517 = vpop.f32.mrf.mxu0
          %v2518 = vadd.f32 0.0, %v2517
          %2519 = vdwg.mxu0
          %v2520 = vtanh.pop %v2473
          %v2521 = vtanh.pop %v2476
          %v2522 = vtanh.pop %v2479
          %v2523 = vtanh.pop %v2482
          %v2524 = vtanh.pop %v2485
          %v2525 = vtanh.pop %v2488
          %v2526 = vtanh.pop %v2491
          %v2527 = vtanh.pop %v2494
          %v2528 = vtanh.pop %v2497
          %v2529 = vtanh.pop %v2500
          %v2530 = vtanh.pop %v2503
          %v2531 = vtanh.pop %v2506
          %v2532 = vtanh.pop %v2509
          %v2533 = vtanh.pop %v2512
          %v2534 = vtanh.pop %v2515
          %v2535 = vtanh.pop %v2518
          %2536 = vst [vmem:[#allocation16] sm:$0xff] %v2520
          %2537 = vst [vmem:[#allocation16 + $0x8] sm:$0xff] %v2521
          %2538 = vst [vmem:[#allocation16 + $0x10] sm:$0xff] %v2522
          %2539 = vst [vmem:[#allocation16 + $0x18] sm:$0xff] %v2523
          %2540 = vst [vmem:[#allocation16 + $0x20] sm:$0xff] %v2524
          %2541 = vst [vmem:[#allocation16 + $0x28] sm:$0xff] %v2525
          %2542 = vst [vmem:[#allocation16 + $0x30] sm:$0xff] %v2526
          %2543 = vst [vmem:[#allocation16 + $0x38] sm:$0xff] %v2527
          %2544 = vst [vmem:[#allocation16 + $0x40] sm:$0xff] %v2528
          %2545 = vst [vmem:[#allocation16 + $0x48] sm:$0xff] %v2529
          %2546 = vst [vmem:[#allocation16 + $0x50] sm:$0xff] %v2530
          %2547 = vst [vmem:[#allocation16 + $0x58] sm:$0xff] %v2531
          %2548 = vst [vmem:[#allocation16 + $0x60] sm:$0xff] %v2532
          %2549 = vst [vmem:[#allocation16 + $0x68] sm:$0xff] %v2533
          %2550 = vst [vmem:[#allocation16 + $0x70] sm:$0xff] %v2534
          %2551 = vst [vmem:[#allocation16 + $0x78] sm:$0xff] %v2535
        $region76: #{tpu_custom_call.1} parent=43 // pred_fallthru
          _
        // Predicated region
        $region77: #{tpu_custom_call.1} parent=43 // pred_check
          %p2552 = pneg %p180
        $region78: #{tpu_custom_call.1} parent=43 // pred_check_branch
          %2554 = sbr.rel (%p2552) target = $region80
        $region79: #{tpu_custom_call.1} parent=43 // pred_region
          %2556 = vsyncadd [#allocation7], 0
          %s2557 = sshll.u32 [#allocation16], 4
          %s2558 = int_to_ptr.vmem [resolvable:$true] %s2557
          %s2559 = sshll.u32 %s6, 4
          %s2560 = int_to_ptr.hbm [resolvable:$true] %s2559
          %2565 = dma.vmem_to_hbm [thread:$0]  %s2558, 2048, %s2560, [#allocation7], 128, 128, 8
        $region80: #{tpu_custom_call.1} parent=43 // pred_fallthru
          _
        // Predicated region
        $region81: #{tpu_custom_call.1} parent=43 // pred_check
          %p2566 = pneg %p180
        $region82: #{tpu_custom_call.1} parent=43 // pred_check_branch
          %2568 = sbr.rel (%p2566) target = $region84
        $region83: #{tpu_custom_call.1} parent=43 // pred_region
          %2570 = dma.done [#allocation7], 2048
        $region84: #{tpu_custom_call.1} parent=43 // pred_fallthru
          _
      $region44: #{tpu_custom_call.1} parent=5 // pred_fallthru
        _
      %p2571 = scmp.le.s32.totalorder 2, %s21
      // Predicated region
      $region85: #{tpu_custom_call.1} parent=5 // pred_check
        %p2572 = pneg %p2571
      $region86: #{tpu_custom_call.1} parent=5 // pred_check_branch
        %2574 = sbr.rel (%p2572) target = $region88
      $region87: #{tpu_custom_call.1} parent=5 // pred_region
        %s2575 = ssub.s32 %s21, 2
      $region88: #{tpu_custom_call.1} parent=5 // pred_fallthru
        _
    $region6: #{tpu_custom_call.1} parent=1 // loop_footer
      %s25 = sadd.s32 1, %s21
    $region7: #{tpu_custom_call.1} parent=1 // loop_footer_branch
      %20 = sbr.rel target = $region3
    $region8: #{tpu_custom_call.1} parent=1 // loop_exit
      _
    %2576 = vsyncpa [#allocation6], 1
    %s2577 = scalar_lea.sflag [#allocation6], 1
    %2578 = vsyncpa %s2577, 1
    %2579 = vsyncpa [#allocation9], 1
    %s2580 = scalar_lea.sflag [#allocation9], 1
    %2581 = vsyncpa %s2580, 1
    %2582 = vsyncpa [#allocation12], 1
    %2583 = vsyncpa [#allocation15], 1
    %2584 = vsyncpa [#allocation7], 1
    %s2585 = scalar_lea.sflag [#allocation7], 1
    %2586 = vsyncpa %s2585, 1

</llo_original>
